<compile_context>
chip_gen: v5e
topology: v5e:2x2
jax: 0.10.0
libtpu: 0.0.40
codegen_flags: <defaults>
</compile_context>

<pallas_src>
import jax
import jax.numpy as jnp
from jax import lax
from jax.experimental import pallas as pl
from jax.experimental.pallas import tpu as pltpu

_GP = 128  # per-gate lane padding: one (8,128) lane tile per gate -> tile-aligned slices


def _egg_receiver_gru_kernel(gi_ref, w_hh_ref, b_hn_ref, out_ref):
    """GRU recurrence over the whole message for one batch tile.

    gi_ref  : (L, BT, 3*_GP) f32 VMEM -- precomputed emb@W_ih + b_ih (+ b_hr/b_hz folded
                                         into the r/z gate tiles), gate-padded.
    w_hh_ref: (2, _GP, 3*_GP) bf16 VMEM -- [hi, lo] bf16x3 split of the hidden->gate
                                           weights, gate-padded (rows/cols >= H are zero).
    b_hn_ref: (1, _GP) f32 VMEM -- hidden bias of the n gate only (must stay inside r*(.)).
    out_ref : (BT, _GP) f32 VMEM -- final hidden state (lanes >= H are exactly zero).
    """
    L = gi_ref.shape[0]
    BT = out_ref.shape[0]

    w_hi = w_hh_ref[0]            # (_GP, 3*_GP) bf16
    w_lo = w_hh_ref[1]            # (_GP, 3*_GP) bf16
    b_hn = b_hn_ref[...]          # (1, _GP) f32

    h = jnp.zeros((BT, _GP), dtype=jnp.float32)

    # L is small & static -> fully unrolled; all indices static.
    for t in range(L):
        gi = gi_ref[t]                                   # (BT, 3*_GP), static-index vld

        if t == 0:
            # h == 0 at the first step: skip the matmul entirely.
            gh = jnp.zeros((BT, 3 * _GP), dtype=jnp.float32)
        else:
            # bf16x3 hidden projection: the only op on the serial dependency chain.
            h_hi = h.astype(jnp.bfloat16)
            h_lo = (h - h_hi.astype(jnp.float32)).astype(jnp.bfloat16)
            gh = (jnp.dot(h_hi, w_hi, preferred_element_type=jnp.float32)
                  + jnp.dot(h_lo, w_hi, preferred_element_type=jnp.float32)
                  + jnp.dot(h_hi, w_lo, preferred_element_type=jnp.float32))

        i_r, i_z, i_n = gi[:, :_GP], gi[:, _GP:2 * _GP], gi[:, 2 * _GP:]
        h_r, h_z, h_n = gh[:, :_GP], gh[:, _GP:2 * _GP], gh[:, 2 * _GP:]

        r = jax.nn.sigmoid(i_r + h_r)          # b_ir + b_hr already in i_r
        z = jax.nn.sigmoid(i_z + h_z)          # b_iz + b_hz already in i_z
        n = jnp.tanh(i_n + r * (h_n + b_hn))   # b_hn stays inside r*(...) (PyTorch GRU)
        h = n + z * (h - n)                    # == (1-z)*n + z*h; padded lanes of h stay 0

    out_ref[...] = h


def prepare_receiver_params(params, hidden_dim):
    """One-time weight preparation (cache per parameter set; NOT on the per-call path).

    Folds emb @ W_ih (+ b_ih, + r/z slices of b_hh) into a per-token gather table,
    gate-pads everything to one 128-lane tile per gate ([r | z | n]), and performs the
    bf16x3 split of W_hh once.
    """
    H = hidden_dim
    assert H <= _GP, "hidden dim must fit in one 128-lane gate tile"
    pad = _GP - H

    emb = params["emb"].astype(jnp.float32)
    w_ih = params["w_ih"].astype(jnp.float32)
    w_hh = params["w_hh"].astype(jnp.float32)
    b_ih = params["b_ih"].astype(jnp.float32)
    b_hh = params["b_hh"].astype(jnp.float32)
    V = emb.shape[0]

    # Per-token input projection; fold b_ih fully and the r/z slices of b_hh (they add to
    # the pre-activation directly).  b_hn must remain separate: n = tanh(i_n + r*(h_n+b_hn)).
    bias = b_ih.at[: 2 * H].add(b_hh[: 2 * H])
    w_in = jnp.dot(emb, w_ih, precision=lax.Precision.HIGHEST) + bias        # (V, 3H)

    # One pad per tensor (no scatter chains).
    w_in_p = jnp.pad(w_in.reshape(V, 3, H),
                     ((0, 0), (0, 0), (0, pad))).reshape(V, 3 * _GP)          # (V, 3*_GP)
    w_hh_p = jnp.pad(w_hh.reshape(H, 3, H),
                     ((0, pad), (0, 0), (0, pad))).reshape(_GP, 3 * _GP)      # (_GP, 3*_GP)
    b_hn_p = jnp.pad(b_hh[2 * H:], (0, pad)).reshape(1, _GP)                  # (1, _GP)

    # bf16x3 split of W_hh, done once here instead of every recurrence step.
    w_hi = w_hh_p.astype(jnp.bfloat16)
    w_lo = (w_hh_p - w_hi.astype(jnp.float32)).astype(jnp.bfloat16)
    w_hh_split = jnp.stack([w_hi, w_lo], axis=0)                              # (2,_GP,3*_GP)

    return {"w_in_table": w_in_p, "w_hh_split": w_hh_split, "b_hn": b_hn_p}


def nav_agent_as_egg_receiver(message_tokens, prepared, *, nav_rnn_hidden_dim,
                              no_comm_mode=False):
    """Forward pass of NavAgentAsEggReceiver.

    message_tokens: (B, L) int token ids.
    prepared: output of prepare_receiver_params (computed once per parameter set).
    Returns (output (B, H), dummy_log_probs (B,), dummy_entropy (B,)).
    """
    B, L = message_tokens.shape
    H = nav_rnn_hidden_dim
    dummy = jnp.zeros((B,), jnp.float32)   # dummy log_probs / entropy (no kernel work)

    if no_comm_mode:
        # TODO(synk): device-placement logic of the PyTorch module (receiver_input['image']
        # device, .to(device)) has no Pallas equivalent; no_comm_mode just returns zeros.
        return jnp.zeros((B, H), jnp.float32), dummy, dummy

    w_in_table = prepared["w_in_table"]      # (V, 3*_GP) f32
    w_hh_split = prepared["w_hh_split"]      # (2, _GP, 3*_GP) bf16
    b_hn = prepared["b_hn"]                  # (1, _GP) f32

    # Token gather (input projection, biases folded) done once, off the serial in-kernel
    # path; the kernel then reads gi_ref[t] with a static index.
    gi_all = jnp.transpose(w_in_table[message_tokens.astype(jnp.int32)], (1, 0, 2))  # (L,B,3*_GP)

    # Pad batch to a sublane multiple; tile it so a real batch shards across TensorCores.
    B8 = ((B + 7) // 8) * 8
    BT = min(B8, 256)
    Bp = pl.cdiv(B8, BT) * BT
    if Bp != B:
        gi_all = jnp.pad(gi_all, ((0, 0), (0, Bp - B), (0, 0)))

    out = pl.pallas_call(
        _egg_receiver_gru_kernel,
        out_shape=jax.ShapeDtypeStruct((Bp, _GP), jnp.float32),   # lane-dense output
        grid_spec=pltpu.PrefetchScalarGridSpec(
            num_scalar_prefetch=0,
            grid=(Bp // BT,),
            in_specs=[
                pl.BlockSpec((L, BT, 3 * _GP), lambda i: (0, i, 0)),
                pl.BlockSpec((2, _GP, 3 * _GP), lambda i: (0, 0, 0)),
                pl.BlockSpec((1, _GP), lambda i: (0, 0)),
            ],
            out_specs=pl.BlockSpec((BT, _GP), lambda i: (i, 0)),
        ),
        compiler_params=pltpu.CompilerParams(dimension_semantics=("parallel",)),
    )(gi_all, w_hh_split, b_hn)

    return out[:B, :H], dummy, dummy


def init_params(key, vocab_size, embed_dim, hidden_dim):
    k1, k2, k3, k4, k5 = jax.random.split(key, 5)
    scale = 0.1
    return {
        "emb": scale * jax.random.normal(k1, (vocab_size, embed_dim), jnp.float32),
        "w_ih": scale * jax.random.normal(k2, (embed_dim, 3 * hidden_dim), jnp.float32),
        "w_hh": scale * jax.random.normal(k3, (hidden_dim, 3 * hidden_dim), jnp.float32),
        "b_ih": scale * jax.random.normal(k4, (3 * hidden_dim,), jnp.float32),
        "b_hh": scale * jax.random.normal(k5, (3 * hidden_dim,), jnp.float32),
    }


def _reference_forward(message_tokens, params, hidden_dim):
    """Pure-JAX reference: embedding lookup + PyTorch-convention GRU (f32, HIGHEST)."""
    H = hidden_dim
    x_all = params["emb"][message_tokens]                     # (B, L, E)
    B, L, _ = x_all.shape
    h = jnp.zeros((B, H), jnp.float32)
    for t in range(L):
        x = x_all[:, t, :]
        gi = jnp.dot(x, params["w_ih"], precision=lax.Precision.HIGHEST) + params["b_ih"]
        gh = jnp.dot(h, params["w_hh"], precision=lax.Precision.HIGHEST) + params["b_hh"]
        i_r, i_z, i_n = gi[:, :H], gi[:, H:2 * H], gi[:, 2 * H:]
        h_r, h_z, h_n = gh[:, :H], gh[:, H:2 * H], gh[:, 2 * H:]
        r = jax.nn.sigmoid(i_r + h_r)
        z = jax.nn.sigmoid(i_z + h_z)
        n = jnp.tanh(i_n + r * h_n)
        h = (1.0 - z) * n + z * h
    return h


if __name__ == "__main__":
    # Small shapes consistent with the module: batch=2, message length=8,
    # vocab=16, embed=32, nav_rnn_hidden_dim=32.
    B, L, V, E, H = 2, 8, 16, 32, 32

    key = jax.random.PRNGKey(0)
    pkey, tkey = jax.random.split(key)
    params = init_params(pkey, V, E, H)
    message_tokens = jax.random.randint(tkey, (B, L), 0, V, dtype=jnp.int32)

    # One-time weight preparation (in training this is cached per parameter update).
    prepared = prepare_receiver_params(params, H)
    prepared = jax.block_until_ready(prepared)

    fwd = jax.jit(lambda toks: nav_agent_as_egg_receiver(
        toks, prepared, nav_rnn_hidden_dim=H))
    output, log_probs, entropy = fwd(message_tokens)
    jax.block_until_ready((output, log_probs, entropy))

    assert output.shape == (B, H)
    assert log_probs.shape == (B,) and entropy.shape == (B,)
    assert bool(jnp.all(log_probs == 0.0)) and bool(jnp.all(entropy == 0.0))

    # no_comm_mode path (pure wrapper, no kernel work).
    out_nc, lp_nc, ent_nc = nav_agent_as_egg_receiver(
        message_tokens, prepared, nav_rnn_hidden_dim=H, no_comm_mode=True)
    assert out_nc.shape == (B, H) and bool(jnp.all(out_nc == 0.0))

    ref = jax.block_until_ready(_reference_forward(message_tokens, params, H))
    assert jnp.allclose(output, ref, atol=1e-4, rtol=1e-3), \
        f"mismatch: max abs err {float(jnp.max(jnp.abs(output - ref)))}"

    print("KERNEL_OK")
</pallas_src>

<mosaic_0001>
module attributes {stable_mosaic.version = 11 : i64} {
  func.func @_egg_receiver_gru_kernel(%arg0: i32, %arg1: memref<8x8x384xf32, #tpu.memory_space<vmem>>, %arg2: memref<2x128x384xbf16, #tpu.memory_space<vmem>>, %arg3: memref<1x128xf32, #tpu.memory_space<vmem>>, %arg4: memref<8x128xf32, #tpu.memory_space<vmem>>) attributes {dimension_semantics = [#tpu.dimension_semantics<parallel>], iteration_bounds = array<i64: 1>, scalar_prefetch = 0 : i64, scratch_operands = 0 : i64, tpu.core_type = #tpu.core_type<tc>, window_params = [{transform_indices = @transform_0, window_bounds = array<i64: 8, 8, 384>}, {pipeline_mode = #tpu.pipeline_mode<synchronous>, transform_indices = @transform_1, window_bounds = array<i64: 2, 128, 384>}, {pipeline_mode = #tpu.pipeline_mode<synchronous>, transform_indices = @transform_2, window_bounds = array<i64: 1, 128>}, {transform_indices = @transform_3, window_bounds = array<i64: 8, 128>}]} {
    %c0 = arith.constant 0 : index
    %c0_0 = arith.constant 0 : index
    %c0_1 = arith.constant 0 : index
    %0 = vector.load %arg2[%c0, %c0_0, %c0_1] : memref<2x128x384xbf16, #tpu.memory_space<vmem>>, vector<1x128x384xbf16>
    %1 = vector.shape_cast %0 : vector<1x128x384xbf16> to vector<128x384xbf16>
    %c1 = arith.constant 1 : index
    %c0_2 = arith.constant 0 : index
    %c0_3 = arith.constant 0 : index
    %2 = vector.load %arg2[%c1, %c0_2, %c0_3] : memref<2x128x384xbf16, #tpu.memory_space<vmem>>, vector<1x128x384xbf16>
    %3 = vector.shape_cast %2 : vector<1x128x384xbf16> to vector<128x384xbf16>
    %c0_4 = arith.constant 0 : index
    %c0_5 = arith.constant 0 : index
    %4 = vector.load %arg3[%c0_4, %c0_5] : memref<1x128xf32, #tpu.memory_space<vmem>>, vector<1x128xf32>
    %cst = arith.constant 0.000000e+00 : f32
    %5 = vector.broadcast %cst : f32 to vector<8x128xf32>
    %c0_6 = arith.constant 0 : index
    %c0_7 = arith.constant 0 : index
    %c0_8 = arith.constant 0 : index
    %6 = vector.load %arg1[%c0_6, %c0_7, %c0_8] : memref<8x8x384xf32, #tpu.memory_space<vmem>>, vector<1x8x384xf32>
    %7 = vector.shape_cast %6 : vector<1x8x384xf32> to vector<8x384xf32>
    %cst_9 = arith.constant 0.000000e+00 : f32
    %8 = vector.broadcast %cst_9 : f32 to vector<8x384xf32>
    %9 = vector.extract_strided_slice %7 {offsets = [0, 0], sizes = [8, 128], strides = [1, 1]} : vector<8x384xf32> to vector<8x128xf32>
    %10 = vector.extract_strided_slice %7 {offsets = [0, 128], sizes = [8, 128], strides = [1, 1]} : vector<8x384xf32> to vector<8x128xf32>
    %11 = vector.extract_strided_slice %7 {offsets = [0, 256], sizes = [8, 128], strides = [1, 1]} : vector<8x384xf32> to vector<8x128xf32>
    %12 = vector.extract_strided_slice %8 {offsets = [0, 0], sizes = [8, 128], strides = [1, 1]} : vector<8x384xf32> to vector<8x128xf32>
    %13 = vector.extract_strided_slice %8 {offsets = [0, 128], sizes = [8, 128], strides = [1, 1]} : vector<8x384xf32> to vector<8x128xf32>
    %14 = vector.extract_strided_slice %8 {offsets = [0, 256], sizes = [8, 128], strides = [1, 1]} : vector<8x384xf32> to vector<8x128xf32>
    %15 = arith.addf %9, %12 : vector<8x128xf32>
    %16 = arith.negf %15 : vector<8x128xf32>
    %17 = math.exp %16 : vector<8x128xf32>
    %cst_10 = arith.constant 1.000000e+00 : f32
    %18 = vector.broadcast %cst_10 : f32 to vector<8x128xf32>
    %19 = arith.addf %18, %17 : vector<8x128xf32>
    %20 = arith.divf %18, %19 : vector<8x128xf32>
    %21 = arith.addf %10, %13 : vector<8x128xf32>
    %22 = arith.negf %21 : vector<8x128xf32>
    %23 = math.exp %22 : vector<8x128xf32>
    %cst_11 = arith.constant 1.000000e+00 : f32
    %24 = vector.broadcast %cst_11 : f32 to vector<8x128xf32>
    %25 = arith.addf %24, %23 : vector<8x128xf32>
    %26 = arith.divf %24, %25 : vector<8x128xf32>
    %27 = vector.broadcast %4 : vector<1x128xf32> to vector<8x128xf32>
    %28 = arith.addf %14, %27 : vector<8x128xf32>
    %29 = arith.mulf %20, %28 : vector<8x128xf32>
    %30 = arith.addf %11, %29 : vector<8x128xf32>
    %31 = math.tanh %30 : vector<8x128xf32>
    %32 = arith.subf %5, %31 : vector<8x128xf32>
    %33 = arith.mulf %26, %32 : vector<8x128xf32>
    %34 = arith.addf %31, %33 : vector<8x128xf32>
    %c1_12 = arith.constant 1 : index
    %c0_13 = arith.constant 0 : index
    %c0_14 = arith.constant 0 : index
    %35 = vector.load %arg1[%c1_12, %c0_13, %c0_14] : memref<8x8x384xf32, #tpu.memory_space<vmem>>, vector<1x8x384xf32>
    %36 = vector.shape_cast %35 : vector<1x8x384xf32> to vector<8x384xf32>
    %37 = arith.truncf %34 : vector<8x128xf32> to vector<8x128xbf16>
    %38 = arith.extf %37 : vector<8x128xbf16> to vector<8x128xf32>
    %39 = arith.subf %34, %38 : vector<8x128xf32>
    %40 = arith.truncf %39 : vector<8x128xf32> to vector<8x128xbf16>
    %cst_15 = arith.constant dense<0.000000e+00> : vector<8x384xf32>
    %41 = tpu.matmul %37, %1, %cst_15 {dimension_numbers = #tpu.dot_dimension_numbers<[1], [0], [0], [1], [0, 0, 1, 1], [], []>} : vector<8x128xbf16>, vector<128x384xbf16>, vector<8x384xf32> -> vector<8x384xf32>
    %cst_16 = arith.constant dense<0.000000e+00> : vector<8x384xf32>
    %42 = tpu.matmul %40, %1, %cst_16 {dimension_numbers = #tpu.dot_dimension_numbers<[1], [0], [0], [1], [0, 0, 1, 1], [], []>} : vector<8x128xbf16>, vector<128x384xbf16>, vector<8x384xf32> -> vector<8x384xf32>
    %43 = arith.addf %41, %42 : vector<8x384xf32>
    %cst_17 = arith.constant dense<0.000000e+00> : vector<8x384xf32>
    %44 = tpu.matmul %37, %3, %cst_17 {dimension_numbers = #tpu.dot_dimension_numbers<[1], [0], [0], [1], [0, 0, 1, 1], [], []>} : vector<8x128xbf16>, vector<128x384xbf16>, vector<8x384xf32> -> vector<8x384xf32>
    %45 = arith.addf %43, %44 : vector<8x384xf32>
    %46 = vector.extract_strided_slice %36 {offsets = [0, 0], sizes = [8, 128], strides = [1, 1]} : vector<8x384xf32> to vector<8x128xf32>
    %47 = vector.extract_strided_slice %36 {offsets = [0, 128], sizes = [8, 128], strides = [1, 1]} : vector<8x384xf32> to vector<8x128xf32>
    %48 = vector.extract_strided_slice %36 {offsets = [0, 256], sizes = [8, 128], strides = [1, 1]} : vector<8x384xf32> to vector<8x128xf32>
    %49 = vector.extract_strided_slice %45 {offsets = [0, 0], sizes = [8, 128], strides = [1, 1]} : vector<8x384xf32> to vector<8x128xf32>
    %50 = vector.extract_strided_slice %45 {offsets = [0, 128], sizes = [8, 128], strides = [1, 1]} : vector<8x384xf32> to vector<8x128xf32>
    %51 = vector.extract_strided_slice %45 {offsets = [0, 256], sizes = [8, 128], strides = [1, 1]} : vector<8x384xf32> to vector<8x128xf32>
    %52 = arith.addf %46, %49 : vector<8x128xf32>
    %53 = arith.negf %52 : vector<8x128xf32>
    %54 = math.exp %53 : vector<8x128xf32>
    %cst_18 = arith.constant 1.000000e+00 : f32
    %55 = vector.broadcast %cst_18 : f32 to vector<8x128xf32>
    %56 = arith.addf %55, %54 : vector<8x128xf32>
    %57 = arith.divf %55, %56 : vector<8x128xf32>
    %58 = arith.addf %47, %50 : vector<8x128xf32>
    %59 = arith.negf %58 : vector<8x128xf32>
    %60 = math.exp %59 : vector<8x128xf32>
    %cst_19 = arith.constant 1.000000e+00 : f32
    %61 = vector.broadcast %cst_19 : f32 to vector<8x128xf32>
    %62 = arith.addf %61, %60 : vector<8x128xf32>
    %63 = arith.divf %61, %62 : vector<8x128xf32>
    %64 = vector.broadcast %4 : vector<1x128xf32> to vector<8x128xf32>
    %65 = arith.addf %51, %64 : vector<8x128xf32>
    %66 = arith.mulf %57, %65 : vector<8x128xf32>
    %67 = arith.addf %48, %66 : vector<8x128xf32>
    %68 = math.tanh %67 : vector<8x128xf32>
    %69 = arith.subf %34, %68 : vector<8x128xf32>
    %70 = arith.mulf %63, %69 : vector<8x128xf32>
    %71 = arith.addf %68, %70 : vector<8x128xf32>
    %c2 = arith.constant 2 : index
    %c0_20 = arith.constant 0 : index
    %c0_21 = arith.constant 0 : index
    %72 = vector.load %arg1[%c2, %c0_20, %c0_21] : memref<8x8x384xf32, #tpu.memory_space<vmem>>, vector<1x8x384xf32>
    %73 = vector.shape_cast %72 : vector<1x8x384xf32> to vector<8x384xf32>
    %74 = arith.truncf %71 : vector<8x128xf32> to vector<8x128xbf16>
    %75 = arith.extf %74 : vector<8x128xbf16> to vector<8x128xf32>
    %76 = arith.subf %71, %75 : vector<8x128xf32>
    %77 = arith.truncf %76 : vector<8x128xf32> to vector<8x128xbf16>
    %cst_22 = arith.constant dense<0.000000e+00> : vector<8x384xf32>
    %78 = tpu.matmul %74, %1, %cst_22 {dimension_numbers = #tpu.dot_dimension_numbers<[1], [0], [0], [1], [0, 0, 1, 1], [], []>} : vector<8x128xbf16>, vector<128x384xbf16>, vector<8x384xf32> -> vector<8x384xf32>
    %cst_23 = arith.constant dense<0.000000e+00> : vector<8x384xf32>
    %79 = tpu.matmul %77, %1, %cst_23 {dimension_numbers = #tpu.dot_dimension_numbers<[1], [0], [0], [1], [0, 0, 1, 1], [], []>} : vector<8x128xbf16>, vector<128x384xbf16>, vector<8x384xf32> -> vector<8x384xf32>
    %80 = arith.addf %78, %79 : vector<8x384xf32>
    %cst_24 = arith.constant dense<0.000000e+00> : vector<8x384xf32>
    %81 = tpu.matmul %74, %3, %cst_24 {dimension_numbers = #tpu.dot_dimension_numbers<[1], [0], [0], [1], [0, 0, 1, 1], [], []>} : vector<8x128xbf16>, vector<128x384xbf16>, vector<8x384xf32> -> vector<8x384xf32>
    %82 = arith.addf %80, %81 : vector<8x384xf32>
    %83 = vector.extract_strided_slice %73 {offsets = [0, 0], sizes = [8, 128], strides = [1, 1]} : vector<8x384xf32> to vector<8x128xf32>
    %84 = vector.extract_strided_slice %73 {offsets = [0, 128], sizes = [8, 128], strides = [1, 1]} : vector<8x384xf32> to vector<8x128xf32>
    %85 = vector.extract_strided_slice %73 {offsets = [0, 256], sizes = [8, 128], strides = [1, 1]} : vector<8x384xf32> to vector<8x128xf32>
    %86 = vector.extract_strided_slice %82 {offsets = [0, 0], sizes = [8, 128], strides = [1, 1]} : vector<8x384xf32> to vector<8x128xf32>
    %87 = vector.extract_strided_slice %82 {offsets = [0, 128], sizes = [8, 128], strides = [1, 1]} : vector<8x384xf32> to vector<8x128xf32>
    %88 = vector.extract_strided_slice %82 {offsets = [0, 256], sizes = [8, 128], strides = [1, 1]} : vector<8x384xf32> to vector<8x128xf32>
    %89 = arith.addf %83, %86 : vector<8x128xf32>
    %90 = arith.negf %89 : vector<8x128xf32>
    %91 = math.exp %90 : vector<8x128xf32>
    %cst_25 = arith.constant 1.000000e+00 : f32
    %92 = vector.broadcast %cst_25 : f32 to vector<8x128xf32>
    %93 = arith.addf %92, %91 : vector<8x128xf32>
    %94 = arith.divf %92, %93 : vector<8x128xf32>
    %95 = arith.addf %84, %87 : vector<8x128xf32>
    %96 = arith.negf %95 : vector<8x128xf32>
    %97 = math.exp %96 : vector<8x128xf32>
    %cst_26 = arith.constant 1.000000e+00 : f32
    %98 = vector.broadcast %cst_26 : f32 to vector<8x128xf32>
    %99 = arith.addf %98, %97 : vector<8x128xf32>
    %100 = arith.divf %98, %99 : vector<8x128xf32>
    %101 = vector.broadcast %4 : vector<1x128xf32> to vector<8x128xf32>
    %102 = arith.addf %88, %101 : vector<8x128xf32>
    %103 = arith.mulf %94, %102 : vector<8x128xf32>
    %104 = arith.addf %85, %103 : vector<8x128xf32>
    %105 = math.tanh %104 : vector<8x128xf32>
    %106 = arith.subf %71, %105 : vector<8x128xf32>
    %107 = arith.mulf %100, %106 : vector<8x128xf32>
    %108 = arith.addf %105, %107 : vector<8x128xf32>
    %c3 = arith.constant 3 : index
    %c0_27 = arith.constant 0 : index
    %c0_28 = arith.constant 0 : index
    %109 = vector.load %arg1[%c3, %c0_27, %c0_28] : memref<8x8x384xf32, #tpu.memory_space<vmem>>, vector<1x8x384xf32>
    %110 = vector.shape_cast %109 : vector<1x8x384xf32> to vector<8x384xf32>
    %111 = arith.truncf %108 : vector<8x128xf32> to vector<8x128xbf16>
    %112 = arith.extf %111 : vector<8x128xbf16> to vector<8x128xf32>
    %113 = arith.subf %108, %112 : vector<8x128xf32>
    %114 = arith.truncf %113 : vector<8x128xf32> to vector<8x128xbf16>
    %cst_29 = arith.constant dense<0.000000e+00> : vector<8x384xf32>
    %115 = tpu.matmul %111, %1, %cst_29 {dimension_numbers = #tpu.dot_dimension_numbers<[1], [0], [0], [1], [0, 0, 1, 1], [], []>} : vector<8x128xbf16>, vector<128x384xbf16>, vector<8x384xf32> -> vector<8x384xf32>
    %cst_30 = arith.constant dense<0.000000e+00> : vector<8x384xf32>
    %116 = tpu.matmul %114, %1, %cst_30 {dimension_numbers = #tpu.dot_dimension_numbers<[1], [0], [0], [1], [0, 0, 1, 1], [], []>} : vector<8x128xbf16>, vector<128x384xbf16>, vector<8x384xf32> -> vector<8x384xf32>
    %117 = arith.addf %115, %116 : vector<8x384xf32>
    %cst_31 = arith.constant dense<0.000000e+00> : vector<8x384xf32>
    %118 = tpu.matmul %111, %3, %cst_31 {dimension_numbers = #tpu.dot_dimension_numbers<[1], [0], [0], [1], [0, 0, 1, 1], [], []>} : vector<8x128xbf16>, vector<128x384xbf16>, vector<8x384xf32> -> vector<8x384xf32>
    %119 = arith.addf %117, %118 : vector<8x384xf32>
    %120 = vector.extract_strided_slice %110 {offsets = [0, 0], sizes = [8, 128], strides = [1, 1]} : vector<8x384xf32> to vector<8x128xf32>
    %121 = vector.extract_strided_slice %110 {offsets = [0, 128], sizes = [8, 128], strides = [1, 1]} : vector<8x384xf32> to vector<8x128xf32>
    %122 = vector.extract_strided_slice %110 {offsets = [0, 256], sizes = [8, 128], strides = [1, 1]} : vector<8x384xf32> to vector<8x128xf32>
    %123 = vector.extract_strided_slice %119 {offsets = [0, 0], sizes = [8, 128], strides = [1, 1]} : vector<8x384xf32> to vector<8x128xf32>
    %124 = vector.extract_strided_slice %119 {offsets = [0, 128], sizes = [8, 128], strides = [1, 1]} : vector<8x384xf32> to vector<8x128xf32>
    %125 = vector.extract_strided_slice %119 {offsets = [0, 256], sizes = [8, 128], strides = [1, 1]} : vector<8x384xf32> to vector<8x128xf32>
    %126 = arith.addf %120, %123 : vector<8x128xf32>
    %127 = arith.negf %126 : vector<8x128xf32>
    %128 = math.exp %127 : vector<8x128xf32>
    %cst_32 = arith.constant 1.000000e+00 : f32
    %129 = vector.broadcast %cst_32 : f32 to vector<8x128xf32>
    %130 = arith.addf %129, %128 : vector<8x128xf32>
    %131 = arith.divf %129, %130 : vector<8x128xf32>
    %132 = arith.addf %121, %124 : vector<8x128xf32>
    %133 = arith.negf %132 : vector<8x128xf32>
    %134 = math.exp %133 : vector<8x128xf32>
    %cst_33 = arith.constant 1.000000e+00 : f32
    %135 = vector.broadcast %cst_33 : f32 to vector<8x128xf32>
    %136 = arith.addf %135, %134 : vector<8x128xf32>
    %137 = arith.divf %135, %136 : vector<8x128xf32>
    %138 = vector.broadcast %4 : vector<1x128xf32> to vector<8x128xf32>
    %139 = arith.addf %125, %138 : vector<8x128xf32>
    %140 = arith.mulf %131, %139 : vector<8x128xf32>
    %141 = arith.addf %122, %140 : vector<8x128xf32>
    %142 = math.tanh %141 : vector<8x128xf32>
    %143 = arith.subf %108, %142 : vector<8x128xf32>
    %144 = arith.mulf %137, %143 : vector<8x128xf32>
    %145 = arith.addf %142, %144 : vector<8x128xf32>
    %c4 = arith.constant 4 : index
    %c0_34 = arith.constant 0 : index
    %c0_35 = arith.constant 0 : index
    %146 = vector.load %arg1[%c4, %c0_34, %c0_35] : memref<8x8x384xf32, #tpu.memory_space<vmem>>, vector<1x8x384xf32>
    %147 = vector.shape_cast %146 : vector<1x8x384xf32> to vector<8x384xf32>
    %148 = arith.truncf %145 : vector<8x128xf32> to vector<8x128xbf16>
    %149 = arith.extf %148 : vector<8x128xbf16> to vector<8x128xf32>
    %150 = arith.subf %145, %149 : vector<8x128xf32>
    %151 = arith.truncf %150 : vector<8x128xf32> to vector<8x128xbf16>
    %cst_36 = arith.constant dense<0.000000e+00> : vector<8x384xf32>
    %152 = tpu.matmul %148, %1, %cst_36 {dimension_numbers = #tpu.dot_dimension_numbers<[1], [0], [0], [1], [0, 0, 1, 1], [], []>} : vector<8x128xbf16>, vector<128x384xbf16>, vector<8x384xf32> -> vector<8x384xf32>
    %cst_37 = arith.constant dense<0.000000e+00> : vector<8x384xf32>
    %153 = tpu.matmul %151, %1, %cst_37 {dimension_numbers = #tpu.dot_dimension_numbers<[1], [0], [0], [1], [0, 0, 1, 1], [], []>} : vector<8x128xbf16>, vector<128x384xbf16>, vector<8x384xf32> -> vector<8x384xf32>
    %154 = arith.addf %152, %153 : vector<8x384xf32>
    %cst_38 = arith.constant dense<0.000000e+00> : vector<8x384xf32>
    %155 = tpu.matmul %148, %3, %cst_38 {dimension_numbers = #tpu.dot_dimension_numbers<[1], [0], [0], [1], [0, 0, 1, 1], [], []>} : vector<8x128xbf16>, vector<128x384xbf16>, vector<8x384xf32> -> vector<8x384xf32>
    %156 = arith.addf %154, %155 : vector<8x384xf32>
    %157 = vector.extract_strided_slice %147 {offsets = [0, 0], sizes = [8, 128], strides = [1, 1]} : vector<8x384xf32> to vector<8x128xf32>
    %158 = vector.extract_strided_slice %147 {offsets = [0, 128], sizes = [8, 128], strides = [1, 1]} : vector<8x384xf32> to vector<8x128xf32>
    %159 = vector.extract_strided_slice %147 {offsets = [0, 256], sizes = [8, 128], strides = [1, 1]} : vector<8x384xf32> to vector<8x128xf32>
    %160 = vector.extract_strided_slice %156 {offsets = [0, 0], sizes = [8, 128], strides = [1, 1]} : vector<8x384xf32> to vector<8x128xf32>
    %161 = vector.extract_strided_slice %156 {offsets = [0, 128], sizes = [8, 128], strides = [1, 1]} : vector<8x384xf32> to vector<8x128xf32>
    %162 = vector.extract_strided_slice %156 {offsets = [0, 256], sizes = [8, 128], strides = [1, 1]} : vector<8x384xf32> to vector<8x128xf32>
    %163 = arith.addf %157, %160 : vector<8x128xf32>
    %164 = arith.negf %163 : vector<8x128xf32>
    %165 = math.exp %164 : vector<8x128xf32>
    %cst_39 = arith.constant 1.000000e+00 : f32
    %166 = vector.broadcast %cst_39 : f32 to vector<8x128xf32>
    %167 = arith.addf %166, %165 : vector<8x128xf32>
    %168 = arith.divf %166, %167 : vector<8x128xf32>
    %169 = arith.addf %158, %161 : vector<8x128xf32>
    %170 = arith.negf %169 : vector<8x128xf32>
    %171 = math.exp %170 : vector<8x128xf32>
    %cst_40 = arith.constant 1.000000e+00 : f32
    %172 = vector.broadcast %cst_40 : f32 to vector<8x128xf32>
    %173 = arith.addf %172, %171 : vector<8x128xf32>
    %174 = arith.divf %172, %173 : vector<8x128xf32>
    %175 = vector.broadcast %4 : vector<1x128xf32> to vector<8x128xf32>
    %176 = arith.addf %162, %175 : vector<8x128xf32>
    %177 = arith.mulf %168, %176 : vector<8x128xf32>
    %178 = arith.addf %159, %177 : vector<8x128xf32>
    %179 = math.tanh %178 : vector<8x128xf32>
    %180 = arith.subf %145, %179 : vector<8x128xf32>
    %181 = arith.mulf %174, %180 : vector<8x128xf32>
    %182 = arith.addf %179, %181 : vector<8x128xf32>
    %c5 = arith.constant 5 : index
    %c0_41 = arith.constant 0 : index
    %c0_42 = arith.constant 0 : index
    %183 = vector.load %arg1[%c5, %c0_41, %c0_42] : memref<8x8x384xf32, #tpu.memory_space<vmem>>, vector<1x8x384xf32>
    %184 = vector.shape_cast %183 : vector<1x8x384xf32> to vector<8x384xf32>
    %185 = arith.truncf %182 : vector<8x128xf32> to vector<8x128xbf16>
    %186 = arith.extf %185 : vector<8x128xbf16> to vector<8x128xf32>
    %187 = arith.subf %182, %186 : vector<8x128xf32>
    %188 = arith.truncf %187 : vector<8x128xf32> to vector<8x128xbf16>
    %cst_43 = arith.constant dense<0.000000e+00> : vector<8x384xf32>
    %189 = tpu.matmul %185, %1, %cst_43 {dimension_numbers = #tpu.dot_dimension_numbers<[1], [0], [0], [1], [0, 0, 1, 1], [], []>} : vector<8x128xbf16>, vector<128x384xbf16>, vector<8x384xf32> -> vector<8x384xf32>
    %cst_44 = arith.constant dense<0.000000e+00> : vector<8x384xf32>
    %190 = tpu.matmul %188, %1, %cst_44 {dimension_numbers = #tpu.dot_dimension_numbers<[1], [0], [0], [1], [0, 0, 1, 1], [], []>} : vector<8x128xbf16>, vector<128x384xbf16>, vector<8x384xf32> -> vector<8x384xf32>
    %191 = arith.addf %189, %190 : vector<8x384xf32>
    %cst_45 = arith.constant dense<0.000000e+00> : vector<8x384xf32>
    %192 = tpu.matmul %185, %3, %cst_45 {dimension_numbers = #tpu.dot_dimension_numbers<[1], [0], [0], [1], [0, 0, 1, 1], [], []>} : vector<8x128xbf16>, vector<128x384xbf16>, vector<8x384xf32> -> vector<8x384xf32>
    %193 = arith.addf %191, %192 : vector<8x384xf32>
    %194 = vector.extract_strided_slice %184 {offsets = [0, 0], sizes = [8, 128], strides = [1, 1]} : vector<8x384xf32> to vector<8x128xf32>
    %195 = vector.extract_strided_slice %184 {offsets = [0, 128], sizes = [8, 128], strides = [1, 1]} : vector<8x384xf32> to vector<8x128xf32>
    %196 = vector.extract_strided_slice %184 {offsets = [0, 256], sizes = [8, 128], strides = [1, 1]} : vector<8x384xf32> to vector<8x128xf32>
    %197 = vector.extract_strided_slice %193 {offsets = [0, 0], sizes = [8, 128], strides = [1, 1]} : vector<8x384xf32> to vector<8x128xf32>
    %198 = vector.extract_strided_slice %193 {offsets = [0, 128], sizes = [8, 128], strides = [1, 1]} : vector<8x384xf32> to vector<8x128xf32>
    %199 = vector.extract_strided_slice %193 {offsets = [0, 256], sizes = [8, 128], strides = [1, 1]} : vector<8x384xf32> to vector<8x128xf32>
    %200 = arith.addf %194, %197 : vector<8x128xf32>
    %201 = arith.negf %200 : vector<8x128xf32>
    %202 = math.exp %201 : vector<8x128xf32>
    %cst_46 = arith.constant 1.000000e+00 : f32
    %203 = vector.broadcast %cst_46 : f32 to vector<8x128xf32>
    %204 = arith.addf %203, %202 : vector<8x128xf32>
    %205 = arith.divf %203, %204 : vector<8x128xf32>
    %206 = arith.addf %195, %198 : vector<8x128xf32>
    %207 = arith.negf %206 : vector<8x128xf32>
    %208 = math.exp %207 : vector<8x128xf32>
    %cst_47 = arith.constant 1.000000e+00 : f32
    %209 = vector.broadcast %cst_47 : f32 to vector<8x128xf32>
    %210 = arith.addf %209, %208 : vector<8x128xf32>
    %211 = arith.divf %209, %210 : vector<8x128xf32>
    %212 = vector.broadcast %4 : vector<1x128xf32> to vector<8x128xf32>
    %213 = arith.addf %199, %212 : vector<8x128xf32>
    %214 = arith.mulf %205, %213 : vector<8x128xf32>
    %215 = arith.addf %196, %214 : vector<8x128xf32>
    %216 = math.tanh %215 : vector<8x128xf32>
    %217 = arith.subf %182, %216 : vector<8x128xf32>
    %218 = arith.mulf %211, %217 : vector<8x128xf32>
    %219 = arith.addf %216, %218 : vector<8x128xf32>
    %c6 = arith.constant 6 : index
    %c0_48 = arith.constant 0 : index
    %c0_49 = arith.constant 0 : index
    %220 = vector.load %arg1[%c6, %c0_48, %c0_49] : memref<8x8x384xf32, #tpu.memory_space<vmem>>, vector<1x8x384xf32>
    %221 = vector.shape_cast %220 : vector<1x8x384xf32> to vector<8x384xf32>
    %222 = arith.truncf %219 : vector<8x128xf32> to vector<8x128xbf16>
    %223 = arith.extf %222 : vector<8x128xbf16> to vector<8x128xf32>
    %224 = arith.subf %219, %223 : vector<8x128xf32>
    %225 = arith.truncf %224 : vector<8x128xf32> to vector<8x128xbf16>
    %cst_50 = arith.constant dense<0.000000e+00> : vector<8x384xf32>
    %226 = tpu.matmul %222, %1, %cst_50 {dimension_numbers = #tpu.dot_dimension_numbers<[1], [0], [0], [1], [0, 0, 1, 1], [], []>} : vector<8x128xbf16>, vector<128x384xbf16>, vector<8x384xf32> -> vector<8x384xf32>
    %cst_51 = arith.constant dense<0.000000e+00> : vector<8x384xf32>
    %227 = tpu.matmul %225, %1, %cst_51 {dimension_numbers = #tpu.dot_dimension_numbers<[1], [0], [0], [1], [0, 0, 1, 1], [], []>} : vector<8x128xbf16>, vector<128x384xbf16>, vector<8x384xf32> -> vector<8x384xf32>
    %228 = arith.addf %226, %227 : vector<8x384xf32>
    %cst_52 = arith.constant dense<0.000000e+00> : vector<8x384xf32>
    %229 = tpu.matmul %222, %3, %cst_52 {dimension_numbers = #tpu.dot_dimension_numbers<[1], [0], [0], [1], [0, 0, 1, 1], [], []>} : vector<8x128xbf16>, vector<128x384xbf16>, vector<8x384xf32> -> vector<8x384xf32>
    %230 = arith.addf %228, %229 : vector<8x384xf32>
    %231 = vector.extract_strided_slice %221 {offsets = [0, 0], sizes = [8, 128], strides = [1, 1]} : vector<8x384xf32> to vector<8x128xf32>
    %232 = vector.extract_strided_slice %221 {offsets = [0, 128], sizes = [8, 128], strides = [1, 1]} : vector<8x384xf32> to vector<8x128xf32>
    %233 = vector.extract_strided_slice %221 {offsets = [0, 256], sizes = [8, 128], strides = [1, 1]} : vector<8x384xf32> to vector<8x128xf32>
    %234 = vector.extract_strided_slice %230 {offsets = [0, 0], sizes = [8, 128], strides = [1, 1]} : vector<8x384xf32> to vector<8x128xf32>
    %235 = vector.extract_strided_slice %230 {offsets = [0, 128], sizes = [8, 128], strides = [1, 1]} : vector<8x384xf32> to vector<8x128xf32>
    %236 = vector.extract_strided_slice %230 {offsets = [0, 256], sizes = [8, 128], strides = [1, 1]} : vector<8x384xf32> to vector<8x128xf32>
    %237 = arith.addf %231, %234 : vector<8x128xf32>
    %238 = arith.negf %237 : vector<8x128xf32>
    %239 = math.exp %238 : vector<8x128xf32>
    %cst_53 = arith.constant 1.000000e+00 : f32
    %240 = vector.broadcast %cst_53 : f32 to vector<8x128xf32>
    %241 = arith.addf %240, %239 : vector<8x128xf32>
    %242 = arith.divf %240, %241 : vector<8x128xf32>
    %243 = arith.addf %232, %235 : vector<8x128xf32>
    %244 = arith.negf %243 : vector<8x128xf32>
    %245 = math.exp %244 : vector<8x128xf32>
    %cst_54 = arith.constant 1.000000e+00 : f32
    %246 = vector.broadcast %cst_54 : f32 to vector<8x128xf32>
    %247 = arith.addf %246, %245 : vector<8x128xf32>
    %248 = arith.divf %246, %247 : vector<8x128xf32>
    %249 = vector.broadcast %4 : vector<1x128xf32> to vector<8x128xf32>
    %250 = arith.addf %236, %249 : vector<8x128xf32>
    %251 = arith.mulf %242, %250 : vector<8x128xf32>
    %252 = arith.addf %233, %251 : vector<8x128xf32>
    %253 = math.tanh %252 : vector<8x128xf32>
    %254 = arith.subf %219, %253 : vector<8x128xf32>
    %255 = arith.mulf %248, %254 : vector<8x128xf32>
    %256 = arith.addf %253, %255 : vector<8x128xf32>
    %c7 = arith.constant 7 : index
    %c0_55 = arith.constant 0 : index
    %c0_56 = arith.constant 0 : index
    %257 = vector.load %arg1[%c7, %c0_55, %c0_56] : memref<8x8x384xf32, #tpu.memory_space<vmem>>, vector<1x8x384xf32>
    %258 = vector.shape_cast %257 : vector<1x8x384xf32> to vector<8x384xf32>
    %259 = arith.truncf %256 : vector<8x128xf32> to vector<8x128xbf16>
    %260 = arith.extf %259 : vector<8x128xbf16> to vector<8x128xf32>
    %261 = arith.subf %256, %260 : vector<8x128xf32>
    %262 = arith.truncf %261 : vector<8x128xf32> to vector<8x128xbf16>
    %cst_57 = arith.constant dense<0.000000e+00> : vector<8x384xf32>
    %263 = tpu.matmul %259, %1, %cst_57 {dimension_numbers = #tpu.dot_dimension_numbers<[1], [0], [0], [1], [0, 0, 1, 1], [], []>} : vector<8x128xbf16>, vector<128x384xbf16>, vector<8x384xf32> -> vector<8x384xf32>
    %cst_58 = arith.constant dense<0.000000e+00> : vector<8x384xf32>
    %264 = tpu.matmul %262, %1, %cst_58 {dimension_numbers = #tpu.dot_dimension_numbers<[1], [0], [0], [1], [0, 0, 1, 1], [], []>} : vector<8x128xbf16>, vector<128x384xbf16>, vector<8x384xf32> -> vector<8x384xf32>
    %265 = arith.addf %263, %264 : vector<8x384xf32>
    %cst_59 = arith.constant dense<0.000000e+00> : vector<8x384xf32>
    %266 = tpu.matmul %259, %3, %cst_59 {dimension_numbers = #tpu.dot_dimension_numbers<[1], [0], [0], [1], [0, 0, 1, 1], [], []>} : vector<8x128xbf16>, vector<128x384xbf16>, vector<8x384xf32> -> vector<8x384xf32>
    %267 = arith.addf %265, %266 : vector<8x384xf32>
    %268 = vector.extract_strided_slice %258 {offsets = [0, 0], sizes = [8, 128], strides = [1, 1]} : vector<8x384xf32> to vector<8x128xf32>
    %269 = vector.extract_strided_slice %258 {offsets = [0, 128], sizes = [8, 128], strides = [1, 1]} : vector<8x384xf32> to vector<8x128xf32>
    %270 = vector.extract_strided_slice %258 {offsets = [0, 256], sizes = [8, 128], strides = [1, 1]} : vector<8x384xf32> to vector<8x128xf32>
    %271 = vector.extract_strided_slice %267 {offsets = [0, 0], sizes = [8, 128], strides = [1, 1]} : vector<8x384xf32> to vector<8x128xf32>
    %272 = vector.extract_strided_slice %267 {offsets = [0, 128], sizes = [8, 128], strides = [1, 1]} : vector<8x384xf32> to vector<8x128xf32>
    %273 = vector.extract_strided_slice %267 {offsets = [0, 256], sizes = [8, 128], strides = [1, 1]} : vector<8x384xf32> to vector<8x128xf32>
    %274 = arith.addf %268, %271 : vector<8x128xf32>
    %275 = arith.negf %274 : vector<8x128xf32>
    %276 = math.exp %275 : vector<8x128xf32>
    %cst_60 = arith.constant 1.000000e+00 : f32
    %277 = vector.broadcast %cst_60 : f32 to vector<8x128xf32>
    %278 = arith.addf %277, %276 : vector<8x128xf32>
    %279 = arith.divf %277, %278 : vector<8x128xf32>
    %280 = arith.addf %269, %272 : vector<8x128xf32>
    %281 = arith.negf %280 : vector<8x128xf32>
    %282 = math.exp %281 : vector<8x128xf32>
    %cst_61 = arith.constant 1.000000e+00 : f32
    %283 = vector.broadcast %cst_61 : f32 to vector<8x128xf32>
    %284 = arith.addf %283, %282 : vector<8x128xf32>
    %285 = arith.divf %283, %284 : vector<8x128xf32>
    %286 = vector.broadcast %4 : vector<1x128xf32> to vector<8x128xf32>
    %287 = arith.addf %273, %286 : vector<8x128xf32>
    %288 = arith.mulf %279, %287 : vector<8x128xf32>
    %289 = arith.addf %270, %288 : vector<8x128xf32>
    %290 = math.tanh %289 : vector<8x128xf32>
    %291 = arith.subf %256, %290 : vector<8x128xf32>
    %292 = arith.mulf %285, %291 : vector<8x128xf32>
    %293 = arith.addf %290, %292 : vector<8x128xf32>
    %c0_62 = arith.constant 0 : index
    %c0_63 = arith.constant 0 : index
    %294 = vector.load %arg4[%c0_62, %c0_63] : memref<8x128xf32, #tpu.memory_space<vmem>>, vector<8x128xf32>
    tpu.vector_store %arg4[%c0_62, %c0_63], %293 {strides = array<i32>} : memref<8x128xf32, #tpu.memory_space<vmem>>, vector<8x128xf32>,
    return
  }
  func.func @transform_0(%arg0: i32) -> (i32, i32, i32) {
    %c0_i32 = arith.constant 0 : i32
    %c0_i32_0 = arith.constant 0 : i32
    %c0_i32_1 = arith.constant 0 : i32
    return %c0_i32, %arg0, %c0_i32_0 : i32, i32, i32
  }
  func.func @transform_1(%arg0: i32) -> (i32, i32, i32) {
    %c0_i32 = arith.constant 0 : i32
    %c0_i32_0 = arith.constant 0 : i32
    %c0_i32_1 = arith.constant 0 : i32
    %c0_i32_2 = arith.constant 0 : i32
    return %c0_i32, %c0_i32_0, %c0_i32_1 : i32, i32, i32
  }
  func.func @transform_2(%arg0: i32) -> (i32, i32) {
    %c0_i32 = arith.constant 0 : i32
    %c0_i32_0 = arith.constant 0 : i32
    %c0_i32_1 = arith.constant 0 : i32
    return %c0_i32, %c0_i32_0 : i32, i32
  }
  func.func @transform_3(%arg0: i32) -> (i32, i32) {
    %c0_i32 = arith.constant 0 : i32
    %c0_i32_0 = arith.constant 0 : i32
    return %arg0, %c0_i32 : i32, i32
  }
}

</mosaic_0001>

<llo_original>
// kernel: _lambda_.1
$region0: #{_lambda_.1}
  #allocation0 [shape = 'u32[]', space=smem, size = 0x4, offset = 0x4, fixed_abs, tag = 'smem constant byte address 0x4 - core index']
  #allocation1 [shape = 'u32[72,128]{1,0:T(1,128)}', space=vmem, size = 0x9000, scoped, tag = 'internal scratch']
  %s0 = inlined_call_operand.vmem [shape: f32[8,8,384], index: 0, kind: input, shape index: {}]
  %s1 = inlined_call_operand.vmem [shape: bf16[2,128,384], index: 1, kind: input, shape index: {}]
  %s2 = inlined_call_operand.vmem [shape: f32[1,128], index: 2, kind: input, shape index: {}]
  %s3 = inlined_call_operand.vmem [shape: f32[8,128], index: 3, kind: output, shape index: {}]
  %s4 = sld [smem:[#allocation0]]
  $region22: #{_lambda_.1} parent=0
    _
  %s6 = ssub.s32 1, %s4
  %s7 = scalar_select 0, %s6, %s4
  // Predicated region
  $region2: #{_lambda_.1} parent=0 // pred_check
    _
  $region3: #{_lambda_.1} parent=0 // pred_check_branch
    %9 = sbr.rel (0) target = $region5
  $region4: #{_lambda_.1} parent=0 // pred_region
    _
  $region5: #{_lambda_.1} parent=0 // pred_fallthru
    _
  // Predicated region
  $region6: #{_lambda_.1} parent=0 // pred_check
    _
  $region7: #{_lambda_.1} parent=0 // pred_check_branch
    %11 = sbr.rel (0) target = $region9
  $region8: #{_lambda_.1} parent=0 // pred_region
    _
  $region9: #{_lambda_.1} parent=0 // pred_fallthru
    _
  // Predicated region
  $region10: #{_lambda_.1} parent=0 // pred_check
    _
  $region11: #{_lambda_.1} parent=0 // pred_check_branch
    %13 = sbr.rel (0) target = $region13
  $region12: #{_lambda_.1} parent=0 // pred_region
    _
  $region13: #{_lambda_.1} parent=0 // pred_fallthru
    _
  %v14 = vld [vmem:[%s1] sm:$0xff]
  %v15 = vld [vmem:[%s1 + $0x8] sm:$0xf]
  %v16 = vld [vmem:[%s1 + $0xc] sm:$0xff]
  %v17 = vld [vmem:[%s1 + $0x14] sm:$0xf]
  %v18 = vld [vmem:[%s1 + $0x18] sm:$0xff]
  %v19 = vld [vmem:[%s1 + $0x20] sm:$0xf]
  %v20 = vld [vmem:[%s1 + $0x24] sm:$0xff]
  %v21 = vld [vmem:[%s1 + $0x2c] sm:$0xf]
  %v22 = vld [vmem:[%s1 + $0x30] sm:$0xff]
  %v23 = vld [vmem:[%s1 + $0x38] sm:$0xf]
  %v24 = vld [vmem:[%s1 + $0x3c] sm:$0xff]
  %v25 = vld [vmem:[%s1 + $0x44] sm:$0xf]
  %v26 = vld [vmem:[%s1 + $0x48] sm:$0xff]
  %v27 = vld [vmem:[%s1 + $0x50] sm:$0xf]
  %v28 = vld [vmem:[%s1 + $0x54] sm:$0xff]
  %v29 = vld [vmem:[%s1 + $0x5c] sm:$0xf]
  %v30 = vld [vmem:[%s1 + $0x60] sm:$0xff]
  %v31 = vld [vmem:[%s1 + $0x68] sm:$0xf]
  %v32 = vld [vmem:[%s1 + $0x6c] sm:$0xff]
  %v33 = vld [vmem:[%s1 + $0x74] sm:$0xf]
  %v34 = vld [vmem:[%s1 + $0x78] sm:$0xff]
  %v35 = vld [vmem:[%s1 + $0x80] sm:$0xf]
  %v36 = vld [vmem:[%s1 + $0x84] sm:$0xff]
  %v37 = vld [vmem:[%s1 + $0x8c] sm:$0xf]
  %v38 = vld [vmem:[%s1 + $0x90] sm:$0xff]
  %v39 = vld [vmem:[%s1 + $0x98] sm:$0xf]
  %v40 = vld [vmem:[%s1 + $0x9c] sm:$0xff]
  %v41 = vld [vmem:[%s1 + $0xa4] sm:$0xf]
  %v42 = vld [vmem:[%s1 + $0xa8] sm:$0xff]
  %v43 = vld [vmem:[%s1 + $0xb0] sm:$0xf]
  %v44 = vld [vmem:[%s1 + $0xb4] sm:$0xff]
  %v45 = vld [vmem:[%s1 + $0xbc] sm:$0xf]
  %s46 = scalar_lea.vmem %s1, 192
  %v47 = vld [vmem:[%s46] sm:$0xff]
  %v48 = vld [vmem:[%s46 + $0x8] sm:$0xf]
  %v49 = vld [vmem:[%s46 + $0xc] sm:$0xff]
  %v50 = vld [vmem:[%s46 + $0x14] sm:$0xf]
  %v51 = vld [vmem:[%s46 + $0x18] sm:$0xff]
  %v52 = vld [vmem:[%s46 + $0x20] sm:$0xf]
  %v53 = vld [vmem:[%s46 + $0x24] sm:$0xff]
  %v54 = vld [vmem:[%s46 + $0x2c] sm:$0xf]
  %v55 = vld [vmem:[%s46 + $0x30] sm:$0xff]
  %v56 = vld [vmem:[%s46 + $0x38] sm:$0xf]
  %v57 = vld [vmem:[%s46 + $0x3c] sm:$0xff]
  %v58 = vld [vmem:[%s46 + $0x44] sm:$0xf]
  %v59 = vld [vmem:[%s46 + $0x48] sm:$0xff]
  %v60 = vld [vmem:[%s46 + $0x50] sm:$0xf]
  %v61 = vld [vmem:[%s46 + $0x54] sm:$0xff]
  %v62 = vld [vmem:[%s46 + $0x5c] sm:$0xf]
  %v63 = vld [vmem:[%s46 + $0x60] sm:$0xff]
  %v64 = vld [vmem:[%s46 + $0x68] sm:$0xf]
  %v65 = vld [vmem:[%s46 + $0x6c] sm:$0xff]
  %v66 = vld [vmem:[%s46 + $0x74] sm:$0xf]
  %v67 = vld [vmem:[%s46 + $0x78] sm:$0xff]
  %v68 = vld [vmem:[%s46 + $0x80] sm:$0xf]
  %v69 = vld [vmem:[%s46 + $0x84] sm:$0xff]
  %v70 = vld [vmem:[%s46 + $0x8c] sm:$0xf]
  %v71 = vld [vmem:[%s46 + $0x90] sm:$0xff]
  %v72 = vld [vmem:[%s46 + $0x98] sm:$0xf]
  %v73 = vld [vmem:[%s46 + $0x9c] sm:$0xff]
  %v74 = vld [vmem:[%s46 + $0xa4] sm:$0xf]
  %v75 = vld [vmem:[%s46 + $0xa8] sm:$0xff]
  %v76 = vld [vmem:[%s46 + $0xb0] sm:$0xf]
  %v77 = vld [vmem:[%s46 + $0xb4] sm:$0xff]
  %v78 = vld [vmem:[%s46 + $0xbc] sm:$0xf]
  %v79 = vld [vmem:[%s2] sm:$0x1]
  %v80 = vld [vmem:[%s0] sm:$0xff]
  %v81 = vld [vmem:[%s0 + $0x8] sm:$0xff]
  %v82 = vld [vmem:[%s0 + $0x10] sm:$0xff]
  %v83 = vadd.f32 %v80, 0.0
  %v84 = vxor.u32 %v83, 2147483648
  %v85 = vmul.f32 %v84, 1.442695
  %v86 = vpow.pop %v85
  %v87 = vadd.f32 %v86, 1.0
  %v88 = vrcp.pop %v87
  %v89 = vmul.f32 %v87, %v88
  %v90 = vsub.f32 1.0, %v89
  %v91 = vmul.f32 %v88, %v90
  %v92 = vadd.f32 %v88, %v91
  %vm93 = vweird.f32 %v87
  %vm94 = vweird.f32 %v88
  %vm95 = vmor %vm93, %vm94
  %v96 = vsel %vm95, %v88, %v92
  %v97 = vand.u32 2147483647, %v87
  %vm98 = vcmp.eq.f32.partialorder %v97, 8.507059e+37
  %v99 = vand.u32 %v87, 2147483648
  %v100 = vor.u32 1.1754944e-38, %v99
  %v101 = vsel %vm98, %v100, %v96
  %v102 = vmul.f32 1.0, %v101
  %v103 = vadd.f32 %v81, 0.0
  %v104 = vxor.u32 %v103, 2147483648
  %v105 = vmul.f32 %v104, 1.442695
  %v106 = vpow.pop %v105
  %v107 = vadd.f32 %v106, 1.0
  %v108 = vrcp.pop %v107
  %v109 = vmul.f32 %v107, %v108
  %v110 = vsub.f32 1.0, %v109
  %v111 = vmul.f32 %v108, %v110
  %v112 = vadd.f32 %v108, %v111
  %vm113 = vweird.f32 %v107
  %vm114 = vweird.f32 %v108
  %vm115 = vmor %vm113, %vm114
  %v116 = vsel %vm115, %v108, %v112
  %v117 = vand.u32 2147483647, %v107
  %vm118 = vcmp.eq.f32.partialorder %v117, 8.507059e+37
  %v119 = vand.u32 %v107, 2147483648
  %v120 = vor.u32 1.1754944e-38, %v119
  %v121 = vsel %vm118, %v120, %v116
  %v122 = vmul.f32 1.0, %v121
  %v124 = vperm.slane %v79, 0
  %v126 = vadd.f32 %v124, 0.0
  %v127 = vmul.f32 %v102, %v126
  %v128 = vadd.f32 %v82, %v127
  %v129 = vtanh.pop %v128
  %v130 = vsub.f32 0.0, %v129
  %v131 = vmul.f32 %v122, %v130
  %v132 = vadd.f32 %v129, %v131
  %s133 = scalar_lea.vmem %s0, 24
  %v134 = vld [vmem:[%s133] sm:$0xff]
  %v135 = vld [vmem:[%s133 + $0x8] sm:$0xff]
  %v136 = vld [vmem:[%s133 + $0x10] sm:$0xff]
  %v137 = vpack.c.bf16 %v132, %v132
  %v138 = vunpack.c.l.bf16 %v137
  %v139 = vsub.f32 %v132, %v138
  %v140 = vpack.c.bf16 %v139, %v139
  %v173 = vunpack.c.l.b16 %v14
  %v174 = vunpack.c.h.b16 %v14
  %v175 = vunpack.c.l.b16 %v15
  %v176 = vunpack.c.l.b16 %v16
  %v177 = vunpack.c.h.b16 %v16
  %v178 = vunpack.c.l.b16 %v17
  %v179 = vunpack.c.l.b16 %v18
  %v180 = vunpack.c.h.b16 %v18
  %v181 = vunpack.c.l.b16 %v19
  %v182 = vunpack.c.l.b16 %v20
  %v183 = vunpack.c.h.b16 %v20
  %v184 = vunpack.c.l.b16 %v21
  %v185 = vunpack.c.l.b16 %v22
  %v186 = vunpack.c.h.b16 %v22
  %v187 = vunpack.c.l.b16 %v23
  %v188 = vunpack.c.l.b16 %v24
  %v189 = vunpack.c.h.b16 %v24
  %v190 = vunpack.c.l.b16 %v25
  %v191 = vunpack.c.l.b16 %v26
  %v192 = vunpack.c.h.b16 %v26
  %v193 = vunpack.c.l.b16 %v27
  %v194 = vunpack.c.l.b16 %v28
  %v195 = vunpack.c.h.b16 %v28
  %v196 = vunpack.c.l.b16 %v29
  %v197 = vunpack.c.l.b16 %v30
  %v198 = vunpack.c.h.b16 %v30
  %v199 = vunpack.c.l.b16 %v31
  %v200 = vunpack.c.l.b16 %v32
  %v201 = vunpack.c.h.b16 %v32
  %v202 = vunpack.c.l.b16 %v33
  %v203 = vunpack.c.l.b16 %v34
  %v204 = vunpack.c.h.b16 %v34
  %v205 = vunpack.c.l.b16 %v35
  %v206 = vunpack.c.l.b16 %v36
  %v207 = vunpack.c.h.b16 %v36
  %v208 = vunpack.c.l.b16 %v37
  %v209 = vunpack.c.l.b16 %v38
  %v210 = vunpack.c.h.b16 %v38
  %v211 = vunpack.c.l.b16 %v39
  %v212 = vunpack.c.l.b16 %v40
  %v213 = vunpack.c.h.b16 %v40
  %v214 = vunpack.c.l.b16 %v41
  %v215 = vunpack.c.l.b16 %v42
  %v216 = vunpack.c.h.b16 %v42
  %v217 = vunpack.c.l.b16 %v43
  %v218 = vunpack.c.l.b16 %v44
  %v219 = vunpack.c.h.b16 %v44
  %v220 = vunpack.c.l.b16 %v45
  %v221 = vpack.c.b16 %v176, %v173
  %v222 = vpack.c.b16 %v177, %v174
  %v223 = vpack.c.b16 %v178, %v175
  %v224 = vpack.c.b16 %v182, %v179
  %v225 = vpack.c.b16 %v183, %v180
  %v226 = vpack.c.b16 %v184, %v181
  %v227 = vpack.c.b16 %v188, %v185
  %v228 = vpack.c.b16 %v189, %v186
  %v229 = vpack.c.b16 %v190, %v187
  %v230 = vpack.c.b16 %v194, %v191
  %v231 = vpack.c.b16 %v195, %v192
  %v232 = vpack.c.b16 %v196, %v193
  %v233 = vpack.c.b16 %v200, %v197
  %v234 = vpack.c.b16 %v201, %v198
  %v235 = vpack.c.b16 %v202, %v199
  %v236 = vpack.c.b16 %v206, %v203
  %v237 = vpack.c.b16 %v207, %v204
  %v238 = vpack.c.b16 %v208, %v205
  %v239 = vpack.c.b16 %v212, %v209
  %v240 = vpack.c.b16 %v213, %v210
  %v241 = vpack.c.b16 %v214, %v211
  %v242 = vpack.c.b16 %v218, %v215
  %v243 = vpack.c.b16 %v219, %v216
  %v244 = vpack.c.b16 %v220, %v217
  %269 = vmatpush.bf16.msra.mxu0 %v242
  %270 = vmatpush.bf16.msra.mxu0 %v239
  %271 = vmatpush.bf16.msra.mxu0 %v236
  %272 = vmatpush.bf16.msra.mxu0 %v233
  %273 = vmatpush.bf16.msra.mxu0 %v230
  %274 = vmatpush.bf16.msra.mxu0 %v227
  %275 = vmatpush.bf16.msra.mxu0 %v224
  %276 = vmatpush.bf16.msra.mxu0 %v221
  %277 = vmatmul.bf16.gmra.mxu0 %v140
  %v278 = vpop.f32.mrf.mxu0
  %v279 = vadd.f32 0.0, %v278
  %v280 = vpop.f32.mrf.mxu0
  %281 = vdwg.mxu0
  %282 = vmatpush.bf16.msra.mxu0 %v243
  %283 = vmatpush.bf16.msra.mxu0 %v240
  %284 = vmatpush.bf16.msra.mxu0 %v237
  %285 = vmatpush.bf16.msra.mxu0 %v234
  %286 = vmatpush.bf16.msra.mxu0 %v231
  %287 = vmatpush.bf16.msra.mxu0 %v228
  %288 = vmatpush.bf16.msra.mxu0 %v225
  %289 = vmatpush.bf16.msra.mxu0 %v222
  %290 = vmatmul.bf16.gmra.mxu0 %v140
  %v291 = vpop.f32.mrf.mxu0
  %v292 = vadd.f32 0.0, %v291
  %v293 = vpop.f32.mrf.mxu0
  %294 = vdwg.mxu0
  %295 = vmatpush.bf16.msra.mxu0 %v244
  %296 = vmatpush.bf16.msra.mxu0 %v241
  %297 = vmatpush.bf16.msra.mxu0 %v238
  %298 = vmatpush.bf16.msra.mxu0 %v235
  %299 = vmatpush.bf16.msra.mxu0 %v232
  %300 = vmatpush.bf16.msra.mxu0 %v229
  %301 = vmatpush.bf16.msra.mxu0 %v226
  %302 = vmatpush.bf16.msra.mxu0 %v223
  %303 = vmatmul.bf16.gmra.mxu0 %v140
  %v304 = vpop.f32.mrf.mxu0
  %v305 = vadd.f32 0.0, %v304
  %v306 = vpop.f32.mrf.mxu0
  %307 = vdwg.mxu0
  %308 = vmatpush.bf16.msra.mxu0 %v242
  %309 = vmatpush.bf16.msra.mxu0 %v239
  %310 = vmatpush.bf16.msra.mxu0 %v236
  %311 = vmatpush.bf16.msra.mxu0 %v233
  %312 = vmatpush.bf16.msra.mxu0 %v230
  %313 = vmatpush.bf16.msra.mxu0 %v227
  %314 = vmatpush.bf16.msra.mxu0 %v224
  %315 = vmatpush.bf16.msra.mxu0 %v221
  %316 = vmatmul.bf16.gmra.mxu0 %v137
  %v317 = vpop.f32.mrf.mxu0
  %v318 = vadd.f32 %v279, %v317
  %v319 = vpop.f32.mrf.mxu0
  %320 = vdwg.mxu0
  %321 = vmatpush.bf16.msra.mxu0 %v243
  %322 = vmatpush.bf16.msra.mxu0 %v240
  %323 = vmatpush.bf16.msra.mxu0 %v237
  %324 = vmatpush.bf16.msra.mxu0 %v234
  %325 = vmatpush.bf16.msra.mxu0 %v231
  %326 = vmatpush.bf16.msra.mxu0 %v228
  %327 = vmatpush.bf16.msra.mxu0 %v225
  %328 = vmatpush.bf16.msra.mxu0 %v222
  %329 = vmatmul.bf16.gmra.mxu0 %v137
  %v330 = vpop.f32.mrf.mxu0
  %v331 = vadd.f32 %v292, %v330
  %v332 = vpop.f32.mrf.mxu0
  %333 = vdwg.mxu0
  %334 = vmatpush.bf16.msra.mxu0 %v244
  %335 = vmatpush.bf16.msra.mxu0 %v241
  %336 = vmatpush.bf16.msra.mxu0 %v238
  %337 = vmatpush.bf16.msra.mxu0 %v235
  %338 = vmatpush.bf16.msra.mxu0 %v232
  %339 = vmatpush.bf16.msra.mxu0 %v229
  %340 = vmatpush.bf16.msra.mxu0 %v226
  %341 = vmatpush.bf16.msra.mxu0 %v223
  %342 = vmatmul.bf16.gmra.mxu0 %v137
  %v343 = vpop.f32.mrf.mxu0
  %v344 = vadd.f32 %v305, %v343
  %v345 = vpop.f32.mrf.mxu0
  %346 = vdwg.mxu0
  %v379 = vunpack.c.l.b16 %v47
  %v380 = vunpack.c.h.b16 %v47
  %v381 = vunpack.c.l.b16 %v48
  %v382 = vunpack.c.l.b16 %v49
  %v383 = vunpack.c.h.b16 %v49
  %v384 = vunpack.c.l.b16 %v50
  %v385 = vunpack.c.l.b16 %v51
  %v386 = vunpack.c.h.b16 %v51
  %v387 = vunpack.c.l.b16 %v52
  %v388 = vunpack.c.l.b16 %v53
  %v389 = vunpack.c.h.b16 %v53
  %v390 = vunpack.c.l.b16 %v54
  %v391 = vunpack.c.l.b16 %v55
  %v392 = vunpack.c.h.b16 %v55
  %v393 = vunpack.c.l.b16 %v56
  %v394 = vunpack.c.l.b16 %v57
  %v395 = vunpack.c.h.b16 %v57
  %v396 = vunpack.c.l.b16 %v58
  %v397 = vunpack.c.l.b16 %v59
  %v398 = vunpack.c.h.b16 %v59
  %v399 = vunpack.c.l.b16 %v60
  %v400 = vunpack.c.l.b16 %v61
  %v401 = vunpack.c.h.b16 %v61
  %v402 = vunpack.c.l.b16 %v62
  %v403 = vunpack.c.l.b16 %v63
  %v404 = vunpack.c.h.b16 %v63
  %v405 = vunpack.c.l.b16 %v64
  %v406 = vunpack.c.l.b16 %v65
  %v407 = vunpack.c.h.b16 %v65
  %v408 = vunpack.c.l.b16 %v66
  %v409 = vunpack.c.l.b16 %v67
  %v410 = vunpack.c.h.b16 %v67
  %v411 = vunpack.c.l.b16 %v68
  %v412 = vunpack.c.l.b16 %v69
  %v413 = vunpack.c.h.b16 %v69
  %v414 = vunpack.c.l.b16 %v70
  %v415 = vunpack.c.l.b16 %v71
  %v416 = vunpack.c.h.b16 %v71
  %v417 = vunpack.c.l.b16 %v72
  %v418 = vunpack.c.l.b16 %v73
  %v419 = vunpack.c.h.b16 %v73
  %v420 = vunpack.c.l.b16 %v74
  %v421 = vunpack.c.l.b16 %v75
  %v422 = vunpack.c.h.b16 %v75
  %v423 = vunpack.c.l.b16 %v76
  %v424 = vunpack.c.l.b16 %v77
  %v425 = vunpack.c.h.b16 %v77
  %v426 = vunpack.c.l.b16 %v78
  %v427 = vpack.c.b16 %v382, %v379
  %v428 = vpack.c.b16 %v383, %v380
  %v429 = vpack.c.b16 %v384, %v381
  %v430 = vpack.c.b16 %v388, %v385
  %v431 = vpack.c.b16 %v389, %v386
  %v432 = vpack.c.b16 %v390, %v387
  %v433 = vpack.c.b16 %v394, %v391
  %v434 = vpack.c.b16 %v395, %v392
  %v435 = vpack.c.b16 %v396, %v393
  %v436 = vpack.c.b16 %v400, %v397
  %v437 = vpack.c.b16 %v401, %v398
  %v438 = vpack.c.b16 %v402, %v399
  %v439 = vpack.c.b16 %v406, %v403
  %v440 = vpack.c.b16 %v407, %v404
  %v441 = vpack.c.b16 %v408, %v405
  %v442 = vpack.c.b16 %v412, %v409
  %v443 = vpack.c.b16 %v413, %v410
  %v444 = vpack.c.b16 %v414, %v411
  %v445 = vpack.c.b16 %v418, %v415
  %v446 = vpack.c.b16 %v419, %v416
  %v447 = vpack.c.b16 %v420, %v417
  %v448 = vpack.c.b16 %v424, %v421
  %v449 = vpack.c.b16 %v425, %v422
  %v450 = vpack.c.b16 %v426, %v423
  %475 = vmatpush.bf16.msra.mxu0 %v448
  %476 = vmatpush.bf16.msra.mxu0 %v445
  %477 = vmatpush.bf16.msra.mxu0 %v442
  %478 = vmatpush.bf16.msra.mxu0 %v439
  %479 = vmatpush.bf16.msra.mxu0 %v436
  %480 = vmatpush.bf16.msra.mxu0 %v433
  %481 = vmatpush.bf16.msra.mxu0 %v430
  %482 = vmatpush.bf16.msra.mxu0 %v427
  %483 = vmatmul.bf16.gmra.mxu0 %v137
  %v484 = vpop.f32.mrf.mxu0
  %v485 = vadd.f32 0.0, %v484
  %v486 = vpop.f32.mrf.mxu0
  %487 = vdwg.mxu0
  %488 = vmatpush.bf16.msra.mxu0 %v449
  %489 = vmatpush.bf16.msra.mxu0 %v446
  %490 = vmatpush.bf16.msra.mxu0 %v443
  %491 = vmatpush.bf16.msra.mxu0 %v440
  %492 = vmatpush.bf16.msra.mxu0 %v437
  %493 = vmatpush.bf16.msra.mxu0 %v434
  %494 = vmatpush.bf16.msra.mxu0 %v431
  %495 = vmatpush.bf16.msra.mxu0 %v428
  %496 = vmatmul.bf16.gmra.mxu0 %v137
  %v497 = vpop.f32.mrf.mxu0
  %v498 = vadd.f32 0.0, %v497
  %v499 = vpop.f32.mrf.mxu0
  %500 = vdwg.mxu0
  %501 = vmatpush.bf16.msra.mxu0 %v450
  %502 = vmatpush.bf16.msra.mxu0 %v447
  %503 = vmatpush.bf16.msra.mxu0 %v444
  %504 = vmatpush.bf16.msra.mxu0 %v441
  %505 = vmatpush.bf16.msra.mxu0 %v438
  %506 = vmatpush.bf16.msra.mxu0 %v435
  %507 = vmatpush.bf16.msra.mxu0 %v432
  %508 = vmatpush.bf16.msra.mxu0 %v429
  %509 = vmatmul.bf16.gmra.mxu0 %v137
  %v510 = vpop.f32.mrf.mxu0
  %v511 = vadd.f32 0.0, %v510
  %v512 = vpop.f32.mrf.mxu0
  %513 = vdwg.mxu0
  %v514 = vadd.f32 %v318, %v485
  %v515 = vadd.f32 %v331, %v498
  %v516 = vadd.f32 %v344, %v511
  %v517 = vadd.f32 %v134, %v514
  %v518 = vxor.u32 %v517, 2147483648
  %v519 = vmul.f32 %v518, 1.442695
  %v520 = vpow.pop %v519
  %v521 = vadd.f32 %v520, 1.0
  %v522 = vrcp.pop %v521
  %v523 = vmul.f32 %v521, %v522
  %v524 = vsub.f32 1.0, %v523
  %v525 = vmul.f32 %v522, %v524
  %v526 = vadd.f32 %v522, %v525
  %vm527 = vweird.f32 %v521
  %vm528 = vweird.f32 %v522
  %vm529 = vmor %vm527, %vm528
  %v530 = vsel %vm529, %v522, %v526
  %v531 = vand.u32 2147483647, %v521
  %vm532 = vcmp.eq.f32.partialorder %v531, 8.507059e+37
  %v533 = vand.u32 %v521, 2147483648
  %v534 = vor.u32 1.1754944e-38, %v533
  %v535 = vsel %vm532, %v534, %v530
  %v536 = vmul.f32 1.0, %v535
  %v537 = vadd.f32 %v135, %v515
  %v538 = vxor.u32 %v537, 2147483648
  %v539 = vmul.f32 %v538, 1.442695
  %v540 = vpow.pop %v539
  %v541 = vadd.f32 %v540, 1.0
  %v542 = vrcp.pop %v541
  %v543 = vmul.f32 %v541, %v542
  %v544 = vsub.f32 1.0, %v543
  %v545 = vmul.f32 %v542, %v544
  %v546 = vadd.f32 %v542, %v545
  %vm547 = vweird.f32 %v541
  %vm548 = vweird.f32 %v542
  %vm549 = vmor %vm547, %vm548
  %v550 = vsel %vm549, %v542, %v546
  %v551 = vand.u32 2147483647, %v541
  %vm552 = vcmp.eq.f32.partialorder %v551, 8.507059e+37
  %v553 = vand.u32 %v541, 2147483648
  %v554 = vor.u32 1.1754944e-38, %v553
  %v555 = vsel %vm552, %v554, %v550
  %v556 = vmul.f32 1.0, %v555
  %v557 = vadd.f32 %v516, %v124
  %v558 = vmul.f32 %v536, %v557
  %v559 = vadd.f32 %v136, %v558
  %v560 = vtanh.pop %v559
  %v561 = vsub.f32 %v132, %v560
  %v562 = vmul.f32 %v556, %v561
  %v563 = vadd.f32 %v560, %v562
  %s564 = scalar_lea.vmem %s0, 48
  %v565 = vld [vmem:[%s564] sm:$0xff]
  %v566 = vld [vmem:[%s564 + $0x8] sm:$0xff]
  %v567 = vld [vmem:[%s564 + $0x10] sm:$0xff]
  %v568 = vpack.c.bf16 %v563, %v563
  %v569 = vunpack.c.l.bf16 %v568
  %v570 = vsub.f32 %v563, %v569
  %v571 = vpack.c.bf16 %v570, %v570
  %572 = vmatpush.bf16.msra.mxu0 %v242
  %573 = vmatpush.bf16.msra.mxu0 %v239
  %574 = vmatpush.bf16.msra.mxu0 %v236
  %575 = vmatpush.bf16.msra.mxu0 %v233
  %576 = vmatpush.bf16.msra.mxu0 %v230
  %577 = vmatpush.bf16.msra.mxu0 %v227
  %578 = vmatpush.bf16.msra.mxu0 %v224
  %579 = vmatpush.bf16.msra.mxu0 %v221
  %580 = vmatmul.bf16.gmra.mxu0 %v571
  %v581 = vpop.f32.mrf.mxu0
  %v582 = vadd.f32 0.0, %v581
  %v583 = vpop.f32.mrf.mxu0
  %584 = vdwg.mxu0
  %585 = vmatpush.bf16.msra.mxu0 %v243
  %586 = vmatpush.bf16.msra.mxu0 %v240
  %587 = vmatpush.bf16.msra.mxu0 %v237
  %588 = vmatpush.bf16.msra.mxu0 %v234
  %589 = vmatpush.bf16.msra.mxu0 %v231
  %590 = vmatpush.bf16.msra.mxu0 %v228
  %591 = vmatpush.bf16.msra.mxu0 %v225
  %592 = vmatpush.bf16.msra.mxu0 %v222
  %593 = vmatmul.bf16.gmra.mxu0 %v571
  %v594 = vpop.f32.mrf.mxu0
  %v595 = vadd.f32 0.0, %v594
  %v596 = vpop.f32.mrf.mxu0
  %597 = vdwg.mxu0
  %598 = vmatpush.bf16.msra.mxu0 %v244
  %599 = vmatpush.bf16.msra.mxu0 %v241
  %600 = vmatpush.bf16.msra.mxu0 %v238
  %601 = vmatpush.bf16.msra.mxu0 %v235
  %602 = vmatpush.bf16.msra.mxu0 %v232
  %603 = vmatpush.bf16.msra.mxu0 %v229
  %604 = vmatpush.bf16.msra.mxu0 %v226
  %605 = vmatpush.bf16.msra.mxu0 %v223
  %606 = vmatmul.bf16.gmra.mxu0 %v571
  %v607 = vpop.f32.mrf.mxu0
  %v608 = vadd.f32 0.0, %v607
  %v609 = vpop.f32.mrf.mxu0
  %610 = vdwg.mxu0
  %611 = vmatpush.bf16.msra.mxu0 %v242
  %612 = vmatpush.bf16.msra.mxu0 %v239
  %613 = vmatpush.bf16.msra.mxu0 %v236
  %614 = vmatpush.bf16.msra.mxu0 %v233
  %615 = vmatpush.bf16.msra.mxu0 %v230
  %616 = vmatpush.bf16.msra.mxu0 %v227
  %617 = vmatpush.bf16.msra.mxu0 %v224
  %618 = vmatpush.bf16.msra.mxu0 %v221
  %619 = vmatmul.bf16.gmra.mxu0 %v568
  %v620 = vpop.f32.mrf.mxu0
  %v621 = vadd.f32 %v582, %v620
  %v622 = vpop.f32.mrf.mxu0
  %623 = vdwg.mxu0
  %624 = vmatpush.bf16.msra.mxu0 %v243
  %625 = vmatpush.bf16.msra.mxu0 %v240
  %626 = vmatpush.bf16.msra.mxu0 %v237
  %627 = vmatpush.bf16.msra.mxu0 %v234
  %628 = vmatpush.bf16.msra.mxu0 %v231
  %629 = vmatpush.bf16.msra.mxu0 %v228
  %630 = vmatpush.bf16.msra.mxu0 %v225
  %631 = vmatpush.bf16.msra.mxu0 %v222
  %632 = vmatmul.bf16.gmra.mxu0 %v568
  %v633 = vpop.f32.mrf.mxu0
  %v634 = vadd.f32 %v595, %v633
  %v635 = vpop.f32.mrf.mxu0
  %636 = vdwg.mxu0
  %637 = vmatpush.bf16.msra.mxu0 %v244
  %638 = vmatpush.bf16.msra.mxu0 %v241
  %639 = vmatpush.bf16.msra.mxu0 %v238
  %640 = vmatpush.bf16.msra.mxu0 %v235
  %641 = vmatpush.bf16.msra.mxu0 %v232
  %642 = vmatpush.bf16.msra.mxu0 %v229
  %643 = vmatpush.bf16.msra.mxu0 %v226
  %644 = vmatpush.bf16.msra.mxu0 %v223
  %645 = vmatmul.bf16.gmra.mxu0 %v568
  %v646 = vpop.f32.mrf.mxu0
  %v647 = vadd.f32 %v608, %v646
  %v648 = vpop.f32.mrf.mxu0
  %649 = vdwg.mxu0
  %650 = vmatpush.bf16.msra.mxu0 %v448
  %651 = vmatpush.bf16.msra.mxu0 %v445
  %652 = vmatpush.bf16.msra.mxu0 %v442
  %653 = vmatpush.bf16.msra.mxu0 %v439
  %654 = vmatpush.bf16.msra.mxu0 %v436
  %655 = vmatpush.bf16.msra.mxu0 %v433
  %656 = vmatpush.bf16.msra.mxu0 %v430
  %657 = vmatpush.bf16.msra.mxu0 %v427
  %658 = vmatmul.bf16.gmra.mxu0 %v568
  %v659 = vpop.f32.mrf.mxu0
  %v660 = vadd.f32 0.0, %v659
  %v661 = vpop.f32.mrf.mxu0
  %662 = vdwg.mxu0
  %663 = vmatpush.bf16.msra.mxu0 %v449
  %664 = vmatpush.bf16.msra.mxu0 %v446
  %665 = vmatpush.bf16.msra.mxu0 %v443
  %666 = vmatpush.bf16.msra.mxu0 %v440
  %667 = vmatpush.bf16.msra.mxu0 %v437
  %668 = vmatpush.bf16.msra.mxu0 %v434
  %669 = vmatpush.bf16.msra.mxu0 %v431
  %670 = vmatpush.bf16.msra.mxu0 %v428
  %671 = vmatmul.bf16.gmra.mxu0 %v568
  %v672 = vpop.f32.mrf.mxu0
  %v673 = vadd.f32 0.0, %v672
  %v674 = vpop.f32.mrf.mxu0
  %675 = vdwg.mxu0
  %676 = vmatpush.bf16.msra.mxu0 %v450
  %677 = vmatpush.bf16.msra.mxu0 %v447
  %678 = vmatpush.bf16.msra.mxu0 %v444
  %679 = vmatpush.bf16.msra.mxu0 %v441
  %680 = vmatpush.bf16.msra.mxu0 %v438
  %681 = vmatpush.bf16.msra.mxu0 %v435
  %682 = vmatpush.bf16.msra.mxu0 %v432
  %683 = vmatpush.bf16.msra.mxu0 %v429
  %684 = vmatmul.bf16.gmra.mxu0 %v568
  %v685 = vpop.f32.mrf.mxu0
  %v686 = vadd.f32 0.0, %v685
  %v687 = vpop.f32.mrf.mxu0
  %688 = vdwg.mxu0
  %v689 = vadd.f32 %v621, %v660
  %v690 = vadd.f32 %v634, %v673
  %v691 = vadd.f32 %v647, %v686
  %v692 = vadd.f32 %v565, %v689
  %v693 = vxor.u32 %v692, 2147483648
  %v694 = vmul.f32 %v693, 1.442695
  %v695 = vpow.pop %v694
  %v696 = vadd.f32 %v695, 1.0
  %v697 = vrcp.pop %v696
  %v698 = vmul.f32 %v696, %v697
  %v699 = vsub.f32 1.0, %v698
  %v700 = vmul.f32 %v697, %v699
  %v701 = vadd.f32 %v697, %v700
  %vm702 = vweird.f32 %v696
  %vm703 = vweird.f32 %v697
  %vm704 = vmor %vm702, %vm703
  %v705 = vsel %vm704, %v697, %v701
  %v706 = vand.u32 2147483647, %v696
  %vm707 = vcmp.eq.f32.partialorder %v706, 8.507059e+37
  %v708 = vand.u32 %v696, 2147483648
  %v709 = vor.u32 1.1754944e-38, %v708
  %v710 = vsel %vm707, %v709, %v705
  %v711 = vmul.f32 1.0, %v710
  %v712 = vadd.f32 %v566, %v690
  %v713 = vxor.u32 %v712, 2147483648
  %v714 = vmul.f32 %v713, 1.442695
  %v715 = vpow.pop %v714
  %v716 = vadd.f32 %v715, 1.0
  %v717 = vrcp.pop %v716
  %v718 = vmul.f32 %v716, %v717
  %v719 = vsub.f32 1.0, %v718
  %v720 = vmul.f32 %v717, %v719
  %v721 = vadd.f32 %v717, %v720
  %vm722 = vweird.f32 %v716
  %vm723 = vweird.f32 %v717
  %vm724 = vmor %vm722, %vm723
  %v725 = vsel %vm724, %v717, %v721
  %v726 = vand.u32 2147483647, %v716
  %vm727 = vcmp.eq.f32.partialorder %v726, 8.507059e+37
  %v728 = vand.u32 %v716, 2147483648
  %v729 = vor.u32 1.1754944e-38, %v728
  %v730 = vsel %vm727, %v729, %v725
  %v731 = vmul.f32 1.0, %v730
  %v732 = vadd.f32 %v691, %v124
  %v733 = vmul.f32 %v711, %v732
  %v734 = vadd.f32 %v567, %v733
  %v735 = vtanh.pop %v734
  %v736 = vsub.f32 %v563, %v735
  %v737 = vmul.f32 %v731, %v736
  %v738 = vadd.f32 %v735, %v737
  %s739 = scalar_lea.vmem %s0, 72
  %v740 = vld [vmem:[%s739] sm:$0xff]
  %v741 = vld [vmem:[%s739 + $0x8] sm:$0xff]
  %v742 = vld [vmem:[%s739 + $0x10] sm:$0xff]
  %v743 = vpack.c.bf16 %v738, %v738
  %v744 = vunpack.c.l.bf16 %v743
  %v745 = vsub.f32 %v738, %v744
  %v746 = vpack.c.bf16 %v745, %v745
  %747 = vmatpush.bf16.msra.mxu0 %v242
  %748 = vmatpush.bf16.msra.mxu0 %v239
  %749 = vmatpush.bf16.msra.mxu0 %v236
  %750 = vmatpush.bf16.msra.mxu0 %v233
  %751 = vmatpush.bf16.msra.mxu0 %v230
  %752 = vmatpush.bf16.msra.mxu0 %v227
  %753 = vmatpush.bf16.msra.mxu0 %v224
  %754 = vmatpush.bf16.msra.mxu0 %v221
  %755 = vmatmul.bf16.gmra.mxu0 %v746
  %v756 = vpop.f32.mrf.mxu0
  %v757 = vadd.f32 0.0, %v756
  %v758 = vpop.f32.mrf.mxu0
  %759 = vdwg.mxu0
  %760 = vmatpush.bf16.msra.mxu0 %v243
  %761 = vmatpush.bf16.msra.mxu0 %v240
  %762 = vmatpush.bf16.msra.mxu0 %v237
  %763 = vmatpush.bf16.msra.mxu0 %v234
  %764 = vmatpush.bf16.msra.mxu0 %v231
  %765 = vmatpush.bf16.msra.mxu0 %v228
  %766 = vmatpush.bf16.msra.mxu0 %v225
  %767 = vmatpush.bf16.msra.mxu0 %v222
  %768 = vmatmul.bf16.gmra.mxu0 %v746
  %v769 = vpop.f32.mrf.mxu0
  %v770 = vadd.f32 0.0, %v769
  %v771 = vpop.f32.mrf.mxu0
  %772 = vdwg.mxu0
  %773 = vmatpush.bf16.msra.mxu0 %v244
  %774 = vmatpush.bf16.msra.mxu0 %v241
  %775 = vmatpush.bf16.msra.mxu0 %v238
  %776 = vmatpush.bf16.msra.mxu0 %v235
  %777 = vmatpush.bf16.msra.mxu0 %v232
  %778 = vmatpush.bf16.msra.mxu0 %v229
  %779 = vmatpush.bf16.msra.mxu0 %v226
  %780 = vmatpush.bf16.msra.mxu0 %v223
  %781 = vmatmul.bf16.gmra.mxu0 %v746
  %v782 = vpop.f32.mrf.mxu0
  %v783 = vadd.f32 0.0, %v782
  %v784 = vpop.f32.mrf.mxu0
  %785 = vdwg.mxu0
  %786 = vmatpush.bf16.msra.mxu0 %v242
  %787 = vmatpush.bf16.msra.mxu0 %v239
  %788 = vmatpush.bf16.msra.mxu0 %v236
  %789 = vmatpush.bf16.msra.mxu0 %v233
  %790 = vmatpush.bf16.msra.mxu0 %v230
  %791 = vmatpush.bf16.msra.mxu0 %v227
  %792 = vmatpush.bf16.msra.mxu0 %v224
  %793 = vmatpush.bf16.msra.mxu0 %v221
  %794 = vmatmul.bf16.gmra.mxu0 %v743
  %v795 = vpop.f32.mrf.mxu0
  %v796 = vadd.f32 %v757, %v795
  %v797 = vpop.f32.mrf.mxu0
  %798 = vdwg.mxu0
  %799 = vmatpush.bf16.msra.mxu0 %v243
  %800 = vmatpush.bf16.msra.mxu0 %v240
  %801 = vmatpush.bf16.msra.mxu0 %v237
  %802 = vmatpush.bf16.msra.mxu0 %v234
  %803 = vmatpush.bf16.msra.mxu0 %v231
  %804 = vmatpush.bf16.msra.mxu0 %v228
  %805 = vmatpush.bf16.msra.mxu0 %v225
  %806 = vmatpush.bf16.msra.mxu0 %v222
  %807 = vmatmul.bf16.gmra.mxu0 %v743
  %v808 = vpop.f32.mrf.mxu0
  %v809 = vadd.f32 %v770, %v808
  %v810 = vpop.f32.mrf.mxu0
  %811 = vdwg.mxu0
  %812 = vmatpush.bf16.msra.mxu0 %v244
  %813 = vmatpush.bf16.msra.mxu0 %v241
  %814 = vmatpush.bf16.msra.mxu0 %v238
  %815 = vmatpush.bf16.msra.mxu0 %v235
  %816 = vmatpush.bf16.msra.mxu0 %v232
  %817 = vmatpush.bf16.msra.mxu0 %v229
  %818 = vmatpush.bf16.msra.mxu0 %v226
  %819 = vmatpush.bf16.msra.mxu0 %v223
  %820 = vmatmul.bf16.gmra.mxu0 %v743
  %v821 = vpop.f32.mrf.mxu0
  %v822 = vadd.f32 %v783, %v821
  %v823 = vpop.f32.mrf.mxu0
  %824 = vdwg.mxu0
  %825 = vmatpush.bf16.msra.mxu0 %v448
  %826 = vmatpush.bf16.msra.mxu0 %v445
  %827 = vmatpush.bf16.msra.mxu0 %v442
  %828 = vmatpush.bf16.msra.mxu0 %v439
  %829 = vmatpush.bf16.msra.mxu0 %v436
  %830 = vmatpush.bf16.msra.mxu0 %v433
  %831 = vmatpush.bf16.msra.mxu0 %v430
  %832 = vmatpush.bf16.msra.mxu0 %v427
  %833 = vmatmul.bf16.gmra.mxu0 %v743
  %v834 = vpop.f32.mrf.mxu0
  %v835 = vadd.f32 0.0, %v834
  %v836 = vpop.f32.mrf.mxu0
  %837 = vdwg.mxu0
  %838 = vmatpush.bf16.msra.mxu0 %v449
  %839 = vmatpush.bf16.msra.mxu0 %v446
  %840 = vmatpush.bf16.msra.mxu0 %v443
  %841 = vmatpush.bf16.msra.mxu0 %v440
  %842 = vmatpush.bf16.msra.mxu0 %v437
  %843 = vmatpush.bf16.msra.mxu0 %v434
  %844 = vmatpush.bf16.msra.mxu0 %v431
  %845 = vmatpush.bf16.msra.mxu0 %v428
  %846 = vmatmul.bf16.gmra.mxu0 %v743
  %v847 = vpop.f32.mrf.mxu0
  %v848 = vadd.f32 0.0, %v847
  %v849 = vpop.f32.mrf.mxu0
  %850 = vdwg.mxu0
  %851 = vmatpush.bf16.msra.mxu0 %v450
  %852 = vmatpush.bf16.msra.mxu0 %v447
  %853 = vmatpush.bf16.msra.mxu0 %v444
  %854 = vmatpush.bf16.msra.mxu0 %v441
  %855 = vmatpush.bf16.msra.mxu0 %v438
  %856 = vmatpush.bf16.msra.mxu0 %v435
  %857 = vmatpush.bf16.msra.mxu0 %v432
  %858 = vmatpush.bf16.msra.mxu0 %v429
  %859 = vmatmul.bf16.gmra.mxu0 %v743
  %v860 = vpop.f32.mrf.mxu0
  %v861 = vadd.f32 0.0, %v860
  %v862 = vpop.f32.mrf.mxu0
  %863 = vdwg.mxu0
  %v864 = vadd.f32 %v796, %v835
  %v865 = vadd.f32 %v809, %v848
  %v866 = vadd.f32 %v822, %v861
  %v867 = vadd.f32 %v740, %v864
  %v868 = vxor.u32 %v867, 2147483648
  %v869 = vmul.f32 %v868, 1.442695
  %v870 = vpow.pop %v869
  %v871 = vadd.f32 %v870, 1.0
  %v872 = vrcp.pop %v871
  %v873 = vmul.f32 %v871, %v872
  %v874 = vsub.f32 1.0, %v873
  %v875 = vmul.f32 %v872, %v874
  %v876 = vadd.f32 %v872, %v875
  %vm877 = vweird.f32 %v871
  %vm878 = vweird.f32 %v872
  %vm879 = vmor %vm877, %vm878
  %v880 = vsel %vm879, %v872, %v876
  %v881 = vand.u32 2147483647, %v871
  %vm882 = vcmp.eq.f32.partialorder %v881, 8.507059e+37
  %v883 = vand.u32 %v871, 2147483648
  %v884 = vor.u32 1.1754944e-38, %v883
  %v885 = vsel %vm882, %v884, %v880
  %v886 = vmul.f32 1.0, %v885
  %v887 = vadd.f32 %v741, %v865
  %v888 = vxor.u32 %v887, 2147483648
  %v889 = vmul.f32 %v888, 1.442695
  %v890 = vpow.pop %v889
  %v891 = vadd.f32 %v890, 1.0
  %v892 = vrcp.pop %v891
  %v893 = vmul.f32 %v891, %v892
  %v894 = vsub.f32 1.0, %v893
  %v895 = vmul.f32 %v892, %v894
  %v896 = vadd.f32 %v892, %v895
  %vm897 = vweird.f32 %v891
  %vm898 = vweird.f32 %v892
  %vm899 = vmor %vm897, %vm898
  %v900 = vsel %vm899, %v892, %v896
  %v901 = vand.u32 2147483647, %v891
  %vm902 = vcmp.eq.f32.partialorder %v901, 8.507059e+37
  %v903 = vand.u32 %v891, 2147483648
  %v904 = vor.u32 1.1754944e-38, %v903
  %v905 = vsel %vm902, %v904, %v900
  %v906 = vmul.f32 1.0, %v905
  %v907 = vadd.f32 %v866, %v124
  %v908 = vmul.f32 %v886, %v907
  %v909 = vadd.f32 %v742, %v908
  %v910 = vtanh.pop %v909
  %v911 = vsub.f32 %v738, %v910
  %v912 = vmul.f32 %v906, %v911
  %v913 = vadd.f32 %v910, %v912
  %s914 = scalar_lea.vmem %s0, 96
  %v915 = vld [vmem:[%s914] sm:$0xff]
  %v916 = vld [vmem:[%s914 + $0x8] sm:$0xff]
  %v917 = vld [vmem:[%s914 + $0x10] sm:$0xff]
  %v918 = vpack.c.bf16 %v913, %v913
  %v919 = vunpack.c.l.bf16 %v918
  %v920 = vsub.f32 %v913, %v919
  %v921 = vpack.c.bf16 %v920, %v920
  %922 = vmatpush.bf16.msra.mxu0 %v242
  %923 = vmatpush.bf16.msra.mxu0 %v239
  %924 = vmatpush.bf16.msra.mxu0 %v236
  %925 = vmatpush.bf16.msra.mxu0 %v233
  %926 = vmatpush.bf16.msra.mxu0 %v230
  %927 = vmatpush.bf16.msra.mxu0 %v227
  %928 = vmatpush.bf16.msra.mxu0 %v224
  %929 = vmatpush.bf16.msra.mxu0 %v221
  %930 = vmatmul.bf16.gmra.mxu0 %v921
  %v931 = vpop.f32.mrf.mxu0
  %v932 = vadd.f32 0.0, %v931
  %v933 = vpop.f32.mrf.mxu0
  %934 = vdwg.mxu0
  %935 = vmatpush.bf16.msra.mxu0 %v243
  %936 = vmatpush.bf16.msra.mxu0 %v240
  %937 = vmatpush.bf16.msra.mxu0 %v237
  %938 = vmatpush.bf16.msra.mxu0 %v234
  %939 = vmatpush.bf16.msra.mxu0 %v231
  %940 = vmatpush.bf16.msra.mxu0 %v228
  %941 = vmatpush.bf16.msra.mxu0 %v225
  %942 = vmatpush.bf16.msra.mxu0 %v222
  %943 = vmatmul.bf16.gmra.mxu0 %v921
  %v944 = vpop.f32.mrf.mxu0
  %v945 = vadd.f32 0.0, %v944
  %v946 = vpop.f32.mrf.mxu0
  %947 = vdwg.mxu0
  %948 = vmatpush.bf16.msra.mxu0 %v244
  %949 = vmatpush.bf16.msra.mxu0 %v241
  %950 = vmatpush.bf16.msra.mxu0 %v238
  %951 = vmatpush.bf16.msra.mxu0 %v235
  %952 = vmatpush.bf16.msra.mxu0 %v232
  %953 = vmatpush.bf16.msra.mxu0 %v229
  %954 = vmatpush.bf16.msra.mxu0 %v226
  %955 = vmatpush.bf16.msra.mxu0 %v223
  %956 = vmatmul.bf16.gmra.mxu0 %v921
  %v957 = vpop.f32.mrf.mxu0
  %v958 = vadd.f32 0.0, %v957
  %v959 = vpop.f32.mrf.mxu0
  %960 = vdwg.mxu0
  %961 = vmatpush.bf16.msra.mxu0 %v242
  %962 = vmatpush.bf16.msra.mxu0 %v239
  %963 = vmatpush.bf16.msra.mxu0 %v236
  %964 = vmatpush.bf16.msra.mxu0 %v233
  %965 = vmatpush.bf16.msra.mxu0 %v230
  %966 = vmatpush.bf16.msra.mxu0 %v227
  %967 = vmatpush.bf16.msra.mxu0 %v224
  %968 = vmatpush.bf16.msra.mxu0 %v221
  %969 = vmatmul.bf16.gmra.mxu0 %v918
  %v970 = vpop.f32.mrf.mxu0
  %v971 = vadd.f32 %v932, %v970
  %v972 = vpop.f32.mrf.mxu0
  %973 = vdwg.mxu0
  %974 = vmatpush.bf16.msra.mxu0 %v243
  %975 = vmatpush.bf16.msra.mxu0 %v240
  %976 = vmatpush.bf16.msra.mxu0 %v237
  %977 = vmatpush.bf16.msra.mxu0 %v234
  %978 = vmatpush.bf16.msra.mxu0 %v231
  %979 = vmatpush.bf16.msra.mxu0 %v228
  %980 = vmatpush.bf16.msra.mxu0 %v225
  %981 = vmatpush.bf16.msra.mxu0 %v222
  %982 = vmatmul.bf16.gmra.mxu0 %v918
  %v983 = vpop.f32.mrf.mxu0
  %v984 = vadd.f32 %v945, %v983
  %v985 = vpop.f32.mrf.mxu0
  %986 = vdwg.mxu0
  %987 = vmatpush.bf16.msra.mxu0 %v244
  %988 = vmatpush.bf16.msra.mxu0 %v241
  %989 = vmatpush.bf16.msra.mxu0 %v238
  %990 = vmatpush.bf16.msra.mxu0 %v235
  %991 = vmatpush.bf16.msra.mxu0 %v232
  %992 = vmatpush.bf16.msra.mxu0 %v229
  %993 = vmatpush.bf16.msra.mxu0 %v226
  %994 = vmatpush.bf16.msra.mxu0 %v223
  %995 = vmatmul.bf16.gmra.mxu0 %v918
  %v996 = vpop.f32.mrf.mxu0
  %v997 = vadd.f32 %v958, %v996
  %v998 = vpop.f32.mrf.mxu0
  %999 = vdwg.mxu0
  %1000 = vmatpush.bf16.msra.mxu0 %v448
  %1001 = vmatpush.bf16.msra.mxu0 %v445
  %1002 = vmatpush.bf16.msra.mxu0 %v442
  %1003 = vmatpush.bf16.msra.mxu0 %v439
  %1004 = vmatpush.bf16.msra.mxu0 %v436
  %1005 = vmatpush.bf16.msra.mxu0 %v433
  %1006 = vmatpush.bf16.msra.mxu0 %v430
  %1007 = vmatpush.bf16.msra.mxu0 %v427
  %1008 = vmatmul.bf16.gmra.mxu0 %v918
  %v1009 = vpop.f32.mrf.mxu0
  %v1010 = vadd.f32 0.0, %v1009
  %v1011 = vpop.f32.mrf.mxu0
  %1012 = vdwg.mxu0
  %1013 = vmatpush.bf16.msra.mxu0 %v449
  %1014 = vmatpush.bf16.msra.mxu0 %v446
  %1015 = vmatpush.bf16.msra.mxu0 %v443
  %1016 = vmatpush.bf16.msra.mxu0 %v440
  %1017 = vmatpush.bf16.msra.mxu0 %v437
  %1018 = vmatpush.bf16.msra.mxu0 %v434
  %1019 = vmatpush.bf16.msra.mxu0 %v431
  %1020 = vmatpush.bf16.msra.mxu0 %v428
  %1021 = vmatmul.bf16.gmra.mxu0 %v918
  %v1022 = vpop.f32.mrf.mxu0
  %v1023 = vadd.f32 0.0, %v1022
  %v1024 = vpop.f32.mrf.mxu0
  %1025 = vdwg.mxu0
  %1026 = vmatpush.bf16.msra.mxu0 %v450
  %1027 = vmatpush.bf16.msra.mxu0 %v447
  %1028 = vmatpush.bf16.msra.mxu0 %v444
  %1029 = vmatpush.bf16.msra.mxu0 %v441
  %1030 = vmatpush.bf16.msra.mxu0 %v438
  %1031 = vmatpush.bf16.msra.mxu0 %v435
  %1032 = vmatpush.bf16.msra.mxu0 %v432
  %1033 = vmatpush.bf16.msra.mxu0 %v429
  %1034 = vmatmul.bf16.gmra.mxu0 %v918
  %v1035 = vpop.f32.mrf.mxu0
  %v1036 = vadd.f32 0.0, %v1035
  %v1037 = vpop.f32.mrf.mxu0
  %1038 = vdwg.mxu0
  %v1039 = vadd.f32 %v971, %v1010
  %v1040 = vadd.f32 %v984, %v1023
  %v1041 = vadd.f32 %v997, %v1036
  %v1042 = vadd.f32 %v915, %v1039
  %v1043 = vxor.u32 %v1042, 2147483648
  %v1044 = vmul.f32 %v1043, 1.442695
  %v1045 = vpow.pop %v1044
  %v1046 = vadd.f32 %v1045, 1.0
  %v1047 = vrcp.pop %v1046
  %v1048 = vmul.f32 %v1046, %v1047
  %v1049 = vsub.f32 1.0, %v1048
  %v1050 = vmul.f32 %v1047, %v1049
  %v1051 = vadd.f32 %v1047, %v1050
  %vm1052 = vweird.f32 %v1046
  %vm1053 = vweird.f32 %v1047
  %vm1054 = vmor %vm1052, %vm1053
  %v1055 = vsel %vm1054, %v1047, %v1051
  %v1056 = vand.u32 2147483647, %v1046
  %vm1057 = vcmp.eq.f32.partialorder %v1056, 8.507059e+37
  %v1058 = vand.u32 %v1046, 2147483648
  %v1059 = vor.u32 1.1754944e-38, %v1058
  %v1060 = vsel %vm1057, %v1059, %v1055
  %v1061 = vmul.f32 1.0, %v1060
  %v1062 = vadd.f32 %v916, %v1040
  %v1063 = vxor.u32 %v1062, 2147483648
  %v1064 = vmul.f32 %v1063, 1.442695
  %v1065 = vpow.pop %v1064
  %v1066 = vadd.f32 %v1065, 1.0
  %v1067 = vrcp.pop %v1066
  %v1068 = vmul.f32 %v1066, %v1067
  %v1069 = vsub.f32 1.0, %v1068
  %v1070 = vmul.f32 %v1067, %v1069
  %v1071 = vadd.f32 %v1067, %v1070
  %vm1072 = vweird.f32 %v1066
  %vm1073 = vweird.f32 %v1067
  %vm1074 = vmor %vm1072, %vm1073
  %v1075 = vsel %vm1074, %v1067, %v1071
  %v1076 = vand.u32 2147483647, %v1066
  %vm1077 = vcmp.eq.f32.partialorder %v1076, 8.507059e+37
  %v1078 = vand.u32 %v1066, 2147483648
  %v1079 = vor.u32 1.1754944e-38, %v1078
  %v1080 = vsel %vm1077, %v1079, %v1075
  %v1081 = vmul.f32 1.0, %v1080
  %v1082 = vadd.f32 %v1041, %v124
  %v1083 = vmul.f32 %v1061, %v1082
  %v1084 = vadd.f32 %v917, %v1083
  %v1085 = vtanh.pop %v1084
  %v1086 = vsub.f32 %v913, %v1085
  %v1087 = vmul.f32 %v1081, %v1086
  %v1088 = vadd.f32 %v1085, %v1087
  %s1089 = scalar_lea.vmem %s0, 120
  %v1090 = vld [vmem:[%s1089] sm:$0xff]
  %v1091 = vld [vmem:[%s1089 + $0x8] sm:$0xff]
  %v1092 = vld [vmem:[%s1089 + $0x10] sm:$0xff]
  %v1093 = vpack.c.bf16 %v1088, %v1088
  %v1094 = vunpack.c.l.bf16 %v1093
  %v1095 = vsub.f32 %v1088, %v1094
  %v1096 = vpack.c.bf16 %v1095, %v1095
  %1097 = vmatpush.bf16.msra.mxu0 %v242
  %1098 = vmatpush.bf16.msra.mxu0 %v239
  %1099 = vmatpush.bf16.msra.mxu0 %v236
  %1100 = vmatpush.bf16.msra.mxu0 %v233
  %1101 = vmatpush.bf16.msra.mxu0 %v230
  %1102 = vmatpush.bf16.msra.mxu0 %v227
  %1103 = vmatpush.bf16.msra.mxu0 %v224
  %1104 = vmatpush.bf16.msra.mxu0 %v221
  %1105 = vmatmul.bf16.gmra.mxu0 %v1096
  %v1106 = vpop.f32.mrf.mxu0
  %v1107 = vadd.f32 0.0, %v1106
  %v1108 = vpop.f32.mrf.mxu0
  %1109 = vdwg.mxu0
  %1110 = vmatpush.bf16.msra.mxu0 %v243
  %1111 = vmatpush.bf16.msra.mxu0 %v240
  %1112 = vmatpush.bf16.msra.mxu0 %v237
  %1113 = vmatpush.bf16.msra.mxu0 %v234
  %1114 = vmatpush.bf16.msra.mxu0 %v231
  %1115 = vmatpush.bf16.msra.mxu0 %v228
  %1116 = vmatpush.bf16.msra.mxu0 %v225
  %1117 = vmatpush.bf16.msra.mxu0 %v222
  %1118 = vmatmul.bf16.gmra.mxu0 %v1096
  %v1119 = vpop.f32.mrf.mxu0
  %v1120 = vadd.f32 0.0, %v1119
  %v1121 = vpop.f32.mrf.mxu0
  %1122 = vdwg.mxu0
  %1123 = vmatpush.bf16.msra.mxu0 %v244
  %1124 = vmatpush.bf16.msra.mxu0 %v241
  %1125 = vmatpush.bf16.msra.mxu0 %v238
  %1126 = vmatpush.bf16.msra.mxu0 %v235
  %1127 = vmatpush.bf16.msra.mxu0 %v232
  %1128 = vmatpush.bf16.msra.mxu0 %v229
  %1129 = vmatpush.bf16.msra.mxu0 %v226
  %1130 = vmatpush.bf16.msra.mxu0 %v223
  %1131 = vmatmul.bf16.gmra.mxu0 %v1096
  %v1132 = vpop.f32.mrf.mxu0
  %v1133 = vadd.f32 0.0, %v1132
  %v1134 = vpop.f32.mrf.mxu0
  %1135 = vdwg.mxu0
  %1136 = vmatpush.bf16.msra.mxu0 %v242
  %1137 = vmatpush.bf16.msra.mxu0 %v239
  %1138 = vmatpush.bf16.msra.mxu0 %v236
  %1139 = vmatpush.bf16.msra.mxu0 %v233
  %1140 = vmatpush.bf16.msra.mxu0 %v230
  %1141 = vmatpush.bf16.msra.mxu0 %v227
  %1142 = vmatpush.bf16.msra.mxu0 %v224
  %1143 = vmatpush.bf16.msra.mxu0 %v221
  %1144 = vmatmul.bf16.gmra.mxu0 %v1093
  %v1145 = vpop.f32.mrf.mxu0
  %v1146 = vadd.f32 %v1107, %v1145
  %v1147 = vpop.f32.mrf.mxu0
  %1148 = vdwg.mxu0
  %1149 = vmatpush.bf16.msra.mxu0 %v243
  %1150 = vmatpush.bf16.msra.mxu0 %v240
  %1151 = vmatpush.bf16.msra.mxu0 %v237
  %1152 = vmatpush.bf16.msra.mxu0 %v234
  %1153 = vmatpush.bf16.msra.mxu0 %v231
  %1154 = vmatpush.bf16.msra.mxu0 %v228
  %1155 = vmatpush.bf16.msra.mxu0 %v225
  %1156 = vmatpush.bf16.msra.mxu0 %v222
  %1157 = vmatmul.bf16.gmra.mxu0 %v1093
  %v1158 = vpop.f32.mrf.mxu0
  %v1159 = vadd.f32 %v1120, %v1158
  %v1160 = vpop.f32.mrf.mxu0
  %1161 = vdwg.mxu0
  %1162 = vmatpush.bf16.msra.mxu0 %v244
  %1163 = vmatpush.bf16.msra.mxu0 %v241
  %1164 = vmatpush.bf16.msra.mxu0 %v238
  %1165 = vmatpush.bf16.msra.mxu0 %v235
  %1166 = vmatpush.bf16.msra.mxu0 %v232
  %1167 = vmatpush.bf16.msra.mxu0 %v229
  %1168 = vmatpush.bf16.msra.mxu0 %v226
  %1169 = vmatpush.bf16.msra.mxu0 %v223
  %1170 = vmatmul.bf16.gmra.mxu0 %v1093
  %v1171 = vpop.f32.mrf.mxu0
  %v1172 = vadd.f32 %v1133, %v1171
  %v1173 = vpop.f32.mrf.mxu0
  %1174 = vdwg.mxu0
  %1175 = vmatpush.bf16.msra.mxu0 %v448
  %1176 = vmatpush.bf16.msra.mxu0 %v445
  %1177 = vmatpush.bf16.msra.mxu0 %v442
  %1178 = vmatpush.bf16.msra.mxu0 %v439
  %1179 = vmatpush.bf16.msra.mxu0 %v436
  %1180 = vmatpush.bf16.msra.mxu0 %v433
  %1181 = vmatpush.bf16.msra.mxu0 %v430
  %1182 = vmatpush.bf16.msra.mxu0 %v427
  %1183 = vmatmul.bf16.gmra.mxu0 %v1093
  %v1184 = vpop.f32.mrf.mxu0
  %v1185 = vadd.f32 0.0, %v1184
  %v1186 = vpop.f32.mrf.mxu0
  %1187 = vdwg.mxu0
  %1188 = vmatpush.bf16.msra.mxu0 %v449
  %1189 = vmatpush.bf16.msra.mxu0 %v446
  %1190 = vmatpush.bf16.msra.mxu0 %v443
  %1191 = vmatpush.bf16.msra.mxu0 %v440
  %1192 = vmatpush.bf16.msra.mxu0 %v437
  %1193 = vmatpush.bf16.msra.mxu0 %v434
  %1194 = vmatpush.bf16.msra.mxu0 %v431
  %1195 = vmatpush.bf16.msra.mxu0 %v428
  %1196 = vmatmul.bf16.gmra.mxu0 %v1093
  %v1197 = vpop.f32.mrf.mxu0
  %v1198 = vadd.f32 0.0, %v1197
  %v1199 = vpop.f32.mrf.mxu0
  %1200 = vdwg.mxu0
  %1201 = vmatpush.bf16.msra.mxu0 %v450
  %1202 = vmatpush.bf16.msra.mxu0 %v447
  %1203 = vmatpush.bf16.msra.mxu0 %v444
  %1204 = vmatpush.bf16.msra.mxu0 %v441
  %1205 = vmatpush.bf16.msra.mxu0 %v438
  %1206 = vmatpush.bf16.msra.mxu0 %v435
  %1207 = vmatpush.bf16.msra.mxu0 %v432
  %1208 = vmatpush.bf16.msra.mxu0 %v429
  %1209 = vmatmul.bf16.gmra.mxu0 %v1093
  %v1210 = vpop.f32.mrf.mxu0
  %v1211 = vadd.f32 0.0, %v1210
  %v1212 = vpop.f32.mrf.mxu0
  %1213 = vdwg.mxu0
  %v1214 = vadd.f32 %v1146, %v1185
  %v1215 = vadd.f32 %v1159, %v1198
  %v1216 = vadd.f32 %v1172, %v1211
  %v1217 = vadd.f32 %v1090, %v1214
  %v1218 = vxor.u32 %v1217, 2147483648
  %v1219 = vmul.f32 %v1218, 1.442695
  %v1220 = vpow.pop %v1219
  %v1221 = vadd.f32 %v1220, 1.0
  %v1222 = vrcp.pop %v1221
  %v1223 = vmul.f32 %v1221, %v1222
  %v1224 = vsub.f32 1.0, %v1223
  %v1225 = vmul.f32 %v1222, %v1224
  %v1226 = vadd.f32 %v1222, %v1225
  %vm1227 = vweird.f32 %v1221
  %vm1228 = vweird.f32 %v1222
  %vm1229 = vmor %vm1227, %vm1228
  %v1230 = vsel %vm1229, %v1222, %v1226
  %v1231 = vand.u32 2147483647, %v1221
  %vm1232 = vcmp.eq.f32.partialorder %v1231, 8.507059e+37
  %v1233 = vand.u32 %v1221, 2147483648
  %v1234 = vor.u32 1.1754944e-38, %v1233
  %v1235 = vsel %vm1232, %v1234, %v1230
  %v1236 = vmul.f32 1.0, %v1235
  %v1237 = vadd.f32 %v1091, %v1215
  %v1238 = vxor.u32 %v1237, 2147483648
  %v1239 = vmul.f32 %v1238, 1.442695
  %v1240 = vpow.pop %v1239
  %v1241 = vadd.f32 %v1240, 1.0
  %v1242 = vrcp.pop %v1241
  %v1243 = vmul.f32 %v1241, %v1242
  %v1244 = vsub.f32 1.0, %v1243
  %v1245 = vmul.f32 %v1242, %v1244
  %v1246 = vadd.f32 %v1242, %v1245
  %vm1247 = vweird.f32 %v1241
  %vm1248 = vweird.f32 %v1242
  %vm1249 = vmor %vm1247, %vm1248
  %v1250 = vsel %vm1249, %v1242, %v1246
  %v1251 = vand.u32 2147483647, %v1241
  %vm1252 = vcmp.eq.f32.partialorder %v1251, 8.507059e+37
  %v1253 = vand.u32 %v1241, 2147483648
  %v1254 = vor.u32 1.1754944e-38, %v1253
  %v1255 = vsel %vm1252, %v1254, %v1250
  %v1256 = vmul.f32 1.0, %v1255
  %v1257 = vadd.f32 %v1216, %v124
  %v1258 = vmul.f32 %v1236, %v1257
  %v1259 = vadd.f32 %v1092, %v1258
  %v1260 = vtanh.pop %v1259
  %v1261 = vsub.f32 %v1088, %v1260
  %v1262 = vmul.f32 %v1256, %v1261
  %v1263 = vadd.f32 %v1260, %v1262
  %s1264 = scalar_lea.vmem %s0, 144
  %v1265 = vld [vmem:[%s1264] sm:$0xff]
  %v1266 = vld [vmem:[%s1264 + $0x8] sm:$0xff]
  %v1267 = vld [vmem:[%s1264 + $0x10] sm:$0xff]
  %v1268 = vpack.c.bf16 %v1263, %v1263
  %v1269 = vunpack.c.l.bf16 %v1268
  %v1270 = vsub.f32 %v1263, %v1269
  %v1271 = vpack.c.bf16 %v1270, %v1270
  %1272 = vmatpush.bf16.msra.mxu0 %v242
  %1273 = vmatpush.bf16.msra.mxu0 %v239
  %1274 = vmatpush.bf16.msra.mxu0 %v236
  %1275 = vmatpush.bf16.msra.mxu0 %v233
  %1276 = vmatpush.bf16.msra.mxu0 %v230
  %1277 = vmatpush.bf16.msra.mxu0 %v227
  %1278 = vmatpush.bf16.msra.mxu0 %v224
  %1279 = vmatpush.bf16.msra.mxu0 %v221
  %1280 = vmatmul.bf16.gmra.mxu0 %v1271
  %v1281 = vpop.f32.mrf.mxu0
  %v1282 = vadd.f32 0.0, %v1281
  %v1283 = vpop.f32.mrf.mxu0
  %1284 = vdwg.mxu0
  %1285 = vmatpush.bf16.msra.mxu0 %v243
  %1286 = vmatpush.bf16.msra.mxu0 %v240
  %1287 = vmatpush.bf16.msra.mxu0 %v237
  %1288 = vmatpush.bf16.msra.mxu0 %v234
  %1289 = vmatpush.bf16.msra.mxu0 %v231
  %1290 = vmatpush.bf16.msra.mxu0 %v228
  %1291 = vmatpush.bf16.msra.mxu0 %v225
  %1292 = vmatpush.bf16.msra.mxu0 %v222
  %1293 = vmatmul.bf16.gmra.mxu0 %v1271
  %v1294 = vpop.f32.mrf.mxu0
  %v1295 = vadd.f32 0.0, %v1294
  %v1296 = vpop.f32.mrf.mxu0
  %1297 = vdwg.mxu0
  %1298 = vmatpush.bf16.msra.mxu0 %v244
  %1299 = vmatpush.bf16.msra.mxu0 %v241
  %1300 = vmatpush.bf16.msra.mxu0 %v238
  %1301 = vmatpush.bf16.msra.mxu0 %v235
  %1302 = vmatpush.bf16.msra.mxu0 %v232
  %1303 = vmatpush.bf16.msra.mxu0 %v229
  %1304 = vmatpush.bf16.msra.mxu0 %v226
  %1305 = vmatpush.bf16.msra.mxu0 %v223
  %1306 = vmatmul.bf16.gmra.mxu0 %v1271
  %v1307 = vpop.f32.mrf.mxu0
  %v1308 = vadd.f32 0.0, %v1307
  %v1309 = vpop.f32.mrf.mxu0
  %1310 = vdwg.mxu0
  %1311 = vmatpush.bf16.msra.mxu0 %v242
  %1312 = vmatpush.bf16.msra.mxu0 %v239
  %1313 = vmatpush.bf16.msra.mxu0 %v236
  %1314 = vmatpush.bf16.msra.mxu0 %v233
  %1315 = vmatpush.bf16.msra.mxu0 %v230
  %1316 = vmatpush.bf16.msra.mxu0 %v227
  %1317 = vmatpush.bf16.msra.mxu0 %v224
  %1318 = vmatpush.bf16.msra.mxu0 %v221
  %1319 = vmatmul.bf16.gmra.mxu0 %v1268
  %v1320 = vpop.f32.mrf.mxu0
  %v1321 = vadd.f32 %v1282, %v1320
  %v1322 = vpop.f32.mrf.mxu0
  %1323 = vdwg.mxu0
  %1324 = vmatpush.bf16.msra.mxu0 %v243
  %1325 = vmatpush.bf16.msra.mxu0 %v240
  %1326 = vmatpush.bf16.msra.mxu0 %v237
  %1327 = vmatpush.bf16.msra.mxu0 %v234
  %1328 = vmatpush.bf16.msra.mxu0 %v231
  %1329 = vmatpush.bf16.msra.mxu0 %v228
  %1330 = vmatpush.bf16.msra.mxu0 %v225
  %1331 = vmatpush.bf16.msra.mxu0 %v222
  %1332 = vmatmul.bf16.gmra.mxu0 %v1268
  %v1333 = vpop.f32.mrf.mxu0
  %v1334 = vadd.f32 %v1295, %v1333
  %v1335 = vpop.f32.mrf.mxu0
  %1336 = vdwg.mxu0
  %1337 = vmatpush.bf16.msra.mxu0 %v244
  %1338 = vmatpush.bf16.msra.mxu0 %v241
  %1339 = vmatpush.bf16.msra.mxu0 %v238
  %1340 = vmatpush.bf16.msra.mxu0 %v235
  %1341 = vmatpush.bf16.msra.mxu0 %v232
  %1342 = vmatpush.bf16.msra.mxu0 %v229
  %1343 = vmatpush.bf16.msra.mxu0 %v226
  %1344 = vmatpush.bf16.msra.mxu0 %v223
  %1345 = vmatmul.bf16.gmra.mxu0 %v1268
  %v1346 = vpop.f32.mrf.mxu0
  %v1347 = vadd.f32 %v1308, %v1346
  %v1348 = vpop.f32.mrf.mxu0
  %1349 = vdwg.mxu0
  %1350 = vmatpush.bf16.msra.mxu0 %v448
  %1351 = vmatpush.bf16.msra.mxu0 %v445
  %1352 = vmatpush.bf16.msra.mxu0 %v442
  %1353 = vmatpush.bf16.msra.mxu0 %v439
  %1354 = vmatpush.bf16.msra.mxu0 %v436
  %1355 = vmatpush.bf16.msra.mxu0 %v433
  %1356 = vmatpush.bf16.msra.mxu0 %v430
  %1357 = vmatpush.bf16.msra.mxu0 %v427
  %1358 = vmatmul.bf16.gmra.mxu0 %v1268
  %v1359 = vpop.f32.mrf.mxu0
  %v1360 = vadd.f32 0.0, %v1359
  %v1361 = vpop.f32.mrf.mxu0
  %1362 = vdwg.mxu0
  %1363 = vmatpush.bf16.msra.mxu0 %v449
  %1364 = vmatpush.bf16.msra.mxu0 %v446
  %1365 = vmatpush.bf16.msra.mxu0 %v443
  %1366 = vmatpush.bf16.msra.mxu0 %v440
  %1367 = vmatpush.bf16.msra.mxu0 %v437
  %1368 = vmatpush.bf16.msra.mxu0 %v434
  %1369 = vmatpush.bf16.msra.mxu0 %v431
  %1370 = vmatpush.bf16.msra.mxu0 %v428
  %1371 = vmatmul.bf16.gmra.mxu0 %v1268
  %v1372 = vpop.f32.mrf.mxu0
  %v1373 = vadd.f32 0.0, %v1372
  %v1374 = vpop.f32.mrf.mxu0
  %1375 = vdwg.mxu0
  %1376 = vmatpush.bf16.msra.mxu0 %v450
  %1377 = vmatpush.bf16.msra.mxu0 %v447
  %1378 = vmatpush.bf16.msra.mxu0 %v444
  %1379 = vmatpush.bf16.msra.mxu0 %v441
  %1380 = vmatpush.bf16.msra.mxu0 %v438
  %1381 = vmatpush.bf16.msra.mxu0 %v435
  %1382 = vmatpush.bf16.msra.mxu0 %v432
  %1383 = vmatpush.bf16.msra.mxu0 %v429
  %1384 = vmatmul.bf16.gmra.mxu0 %v1268
  %v1385 = vpop.f32.mrf.mxu0
  %v1386 = vadd.f32 0.0, %v1385
  %v1387 = vpop.f32.mrf.mxu0
  %1388 = vdwg.mxu0
  %v1389 = vadd.f32 %v1321, %v1360
  %v1390 = vadd.f32 %v1334, %v1373
  %v1391 = vadd.f32 %v1347, %v1386
  %v1392 = vadd.f32 %v1265, %v1389
  %v1393 = vxor.u32 %v1392, 2147483648
  %v1394 = vmul.f32 %v1393, 1.442695
  %v1395 = vpow.pop %v1394
  %v1396 = vadd.f32 %v1395, 1.0
  %v1397 = vrcp.pop %v1396
  %v1398 = vmul.f32 %v1396, %v1397
  %v1399 = vsub.f32 1.0, %v1398
  %v1400 = vmul.f32 %v1397, %v1399
  %v1401 = vadd.f32 %v1397, %v1400
  %vm1402 = vweird.f32 %v1396
  %vm1403 = vweird.f32 %v1397
  %vm1404 = vmor %vm1402, %vm1403
  %v1405 = vsel %vm1404, %v1397, %v1401
  %v1406 = vand.u32 2147483647, %v1396
  %vm1407 = vcmp.eq.f32.partialorder %v1406, 8.507059e+37
  %v1408 = vand.u32 %v1396, 2147483648
  %v1409 = vor.u32 1.1754944e-38, %v1408
  %v1410 = vsel %vm1407, %v1409, %v1405
  %v1411 = vmul.f32 1.0, %v1410
  %v1412 = vadd.f32 %v1266, %v1390
  %v1413 = vxor.u32 %v1412, 2147483648
  %v1414 = vmul.f32 %v1413, 1.442695
  %v1415 = vpow.pop %v1414
  %v1416 = vadd.f32 %v1415, 1.0
  %v1417 = vrcp.pop %v1416
  %v1418 = vmul.f32 %v1416, %v1417
  %v1419 = vsub.f32 1.0, %v1418
  %v1420 = vmul.f32 %v1417, %v1419
  %v1421 = vadd.f32 %v1417, %v1420
  %vm1422 = vweird.f32 %v1416
  %vm1423 = vweird.f32 %v1417
  %vm1424 = vmor %vm1422, %vm1423
  %v1425 = vsel %vm1424, %v1417, %v1421
  %v1426 = vand.u32 2147483647, %v1416
  %vm1427 = vcmp.eq.f32.partialorder %v1426, 8.507059e+37
  %v1428 = vand.u32 %v1416, 2147483648
  %v1429 = vor.u32 1.1754944e-38, %v1428
  %v1430 = vsel %vm1427, %v1429, %v1425
  %v1431 = vmul.f32 1.0, %v1430
  %v1432 = vadd.f32 %v1391, %v124
  %v1433 = vmul.f32 %v1411, %v1432
  %v1434 = vadd.f32 %v1267, %v1433
  %v1435 = vtanh.pop %v1434
  %v1436 = vsub.f32 %v1263, %v1435
  %v1437 = vmul.f32 %v1431, %v1436
  %v1438 = vadd.f32 %v1435, %v1437
  %s1439 = scalar_lea.vmem %s0, 168
  %v1440 = vld [vmem:[%s1439] sm:$0xff]
  %v1441 = vld [vmem:[%s1439 + $0x8] sm:$0xff]
  %v1442 = vld [vmem:[%s1439 + $0x10] sm:$0xff]
  %v1443 = vpack.c.bf16 %v1438, %v1438
  %v1444 = vunpack.c.l.bf16 %v1443
  %v1445 = vsub.f32 %v1438, %v1444
  %v1446 = vpack.c.bf16 %v1445, %v1445
  %1447 = vmatpush.bf16.msra.mxu0 %v242
  %1448 = vmatpush.bf16.msra.mxu0 %v239
  %1449 = vmatpush.bf16.msra.mxu0 %v236
  %1450 = vmatpush.bf16.msra.mxu0 %v233
  %1451 = vmatpush.bf16.msra.mxu0 %v230
  %1452 = vmatpush.bf16.msra.mxu0 %v227
  %1453 = vmatpush.bf16.msra.mxu0 %v224
  %1454 = vmatpush.bf16.msra.mxu0 %v221
  %1455 = vmatmul.bf16.gmra.mxu0 %v1446
  %v1456 = vpop.f32.mrf.mxu0
  %v1457 = vadd.f32 0.0, %v1456
  %v1458 = vpop.f32.mrf.mxu0
  %1459 = vdwg.mxu0
  %1460 = vmatpush.bf16.msra.mxu0 %v243
  %1461 = vmatpush.bf16.msra.mxu0 %v240
  %1462 = vmatpush.bf16.msra.mxu0 %v237
  %1463 = vmatpush.bf16.msra.mxu0 %v234
  %1464 = vmatpush.bf16.msra.mxu0 %v231
  %1465 = vmatpush.bf16.msra.mxu0 %v228
  %1466 = vmatpush.bf16.msra.mxu0 %v225
  %1467 = vmatpush.bf16.msra.mxu0 %v222
  %1468 = vmatmul.bf16.gmra.mxu0 %v1446
  %v1469 = vpop.f32.mrf.mxu0
  %v1470 = vadd.f32 0.0, %v1469
  %v1471 = vpop.f32.mrf.mxu0
  %1472 = vdwg.mxu0
  %1473 = vmatpush.bf16.msra.mxu0 %v244
  %1474 = vmatpush.bf16.msra.mxu0 %v241
  %1475 = vmatpush.bf16.msra.mxu0 %v238
  %1476 = vmatpush.bf16.msra.mxu0 %v235
  %1477 = vmatpush.bf16.msra.mxu0 %v232
  %1478 = vmatpush.bf16.msra.mxu0 %v229
  %1479 = vmatpush.bf16.msra.mxu0 %v226
  %1480 = vmatpush.bf16.msra.mxu0 %v223
  %1481 = vmatmul.bf16.gmra.mxu0 %v1446
  %v1482 = vpop.f32.mrf.mxu0
  %v1483 = vadd.f32 0.0, %v1482
  %v1484 = vpop.f32.mrf.mxu0
  %1485 = vdwg.mxu0
  %1486 = vmatpush.bf16.msra.mxu0 %v242
  %1487 = vmatpush.bf16.msra.mxu0 %v239
  %1488 = vmatpush.bf16.msra.mxu0 %v236
  %1489 = vmatpush.bf16.msra.mxu0 %v233
  %1490 = vmatpush.bf16.msra.mxu0 %v230
  %1491 = vmatpush.bf16.msra.mxu0 %v227
  %1492 = vmatpush.bf16.msra.mxu0 %v224
  %1493 = vmatpush.bf16.msra.mxu0 %v221
  %1494 = vmatmul.bf16.gmra.mxu0 %v1443
  %v1495 = vpop.f32.mrf.mxu0
  %v1496 = vadd.f32 %v1457, %v1495
  %v1497 = vpop.f32.mrf.mxu0
  %1498 = vdwg.mxu0
  %1499 = vmatpush.bf16.msra.mxu0 %v243
  %1500 = vmatpush.bf16.msra.mxu0 %v240
  %1501 = vmatpush.bf16.msra.mxu0 %v237
  %1502 = vmatpush.bf16.msra.mxu0 %v234
  %1503 = vmatpush.bf16.msra.mxu0 %v231
  %1504 = vmatpush.bf16.msra.mxu0 %v228
  %1505 = vmatpush.bf16.msra.mxu0 %v225
  %1506 = vmatpush.bf16.msra.mxu0 %v222
  %1507 = vmatmul.bf16.gmra.mxu0 %v1443
  %v1508 = vpop.f32.mrf.mxu0
  %v1509 = vadd.f32 %v1470, %v1508
  %v1510 = vpop.f32.mrf.mxu0
  %1511 = vdwg.mxu0
  %1512 = vmatpush.bf16.msra.mxu0 %v244
  %1513 = vmatpush.bf16.msra.mxu0 %v241
  %1514 = vmatpush.bf16.msra.mxu0 %v238
  %1515 = vmatpush.bf16.msra.mxu0 %v235
  %1516 = vmatpush.bf16.msra.mxu0 %v232
  %1517 = vmatpush.bf16.msra.mxu0 %v229
  %1518 = vmatpush.bf16.msra.mxu0 %v226
  %1519 = vmatpush.bf16.msra.mxu0 %v223
  %1520 = vmatmul.bf16.gmra.mxu0 %v1443
  %v1521 = vpop.f32.mrf.mxu0
  %v1522 = vadd.f32 %v1483, %v1521
  %v1523 = vpop.f32.mrf.mxu0
  %1524 = vdwg.mxu0
  %1525 = vmatpush.bf16.msra.mxu0 %v448
  %1526 = vmatpush.bf16.msra.mxu0 %v445
  %1527 = vmatpush.bf16.msra.mxu0 %v442
  %1528 = vmatpush.bf16.msra.mxu0 %v439
  %1529 = vmatpush.bf16.msra.mxu0 %v436
  %1530 = vmatpush.bf16.msra.mxu0 %v433
  %1531 = vmatpush.bf16.msra.mxu0 %v430
  %1532 = vmatpush.bf16.msra.mxu0 %v427
  %1533 = vmatmul.bf16.gmra.mxu0 %v1443
  %v1534 = vpop.f32.mrf.mxu0
  %v1535 = vadd.f32 0.0, %v1534
  %v1536 = vpop.f32.mrf.mxu0
  %1537 = vdwg.mxu0
  %1538 = vmatpush.bf16.msra.mxu0 %v449
  %1539 = vmatpush.bf16.msra.mxu0 %v446
  %1540 = vmatpush.bf16.msra.mxu0 %v443
  %1541 = vmatpush.bf16.msra.mxu0 %v440
  %1542 = vmatpush.bf16.msra.mxu0 %v437
  %1543 = vmatpush.bf16.msra.mxu0 %v434
  %1544 = vmatpush.bf16.msra.mxu0 %v431
  %1545 = vmatpush.bf16.msra.mxu0 %v428
  %1546 = vmatmul.bf16.gmra.mxu0 %v1443
  %v1547 = vpop.f32.mrf.mxu0
  %v1548 = vadd.f32 0.0, %v1547
  %v1549 = vpop.f32.mrf.mxu0
  %1550 = vdwg.mxu0
  %1551 = vmatpush.bf16.msra.mxu0 %v450
  %1552 = vmatpush.bf16.msra.mxu0 %v447
  %1553 = vmatpush.bf16.msra.mxu0 %v444
  %1554 = vmatpush.bf16.msra.mxu0 %v441
  %1555 = vmatpush.bf16.msra.mxu0 %v438
  %1556 = vmatpush.bf16.msra.mxu0 %v435
  %1557 = vmatpush.bf16.msra.mxu0 %v432
  %1558 = vmatpush.bf16.msra.mxu0 %v429
  %1559 = vmatmul.bf16.gmra.mxu0 %v1443
  %v1560 = vpop.f32.mrf.mxu0
  %v1561 = vadd.f32 0.0, %v1560
  %v1562 = vpop.f32.mrf.mxu0
  %1563 = vdwg.mxu0
  %v1564 = vadd.f32 %v1496, %v1535
  %v1565 = vadd.f32 %v1509, %v1548
  %v1566 = vadd.f32 %v1522, %v1561
  %v1567 = vadd.f32 %v1440, %v1564
  %v1568 = vxor.u32 %v1567, 2147483648
  %v1569 = vmul.f32 %v1568, 1.442695
  %v1570 = vpow.pop %v1569
  %v1571 = vadd.f32 %v1570, 1.0
  %v1572 = vrcp.pop %v1571
  %v1573 = vmul.f32 %v1571, %v1572
  %v1574 = vsub.f32 1.0, %v1573
  %v1575 = vmul.f32 %v1572, %v1574
  %v1576 = vadd.f32 %v1572, %v1575
  %vm1577 = vweird.f32 %v1571
  %vm1578 = vweird.f32 %v1572
  %vm1579 = vmor %vm1577, %vm1578
  %v1580 = vsel %vm1579, %v1572, %v1576
  %v1581 = vand.u32 2147483647, %v1571
  %vm1582 = vcmp.eq.f32.partialorder %v1581, 8.507059e+37
  %v1583 = vand.u32 %v1571, 2147483648
  %v1584 = vor.u32 1.1754944e-38, %v1583
  %v1585 = vsel %vm1582, %v1584, %v1580
  %v1586 = vmul.f32 1.0, %v1585
  %v1587 = vadd.f32 %v1441, %v1565
  %v1588 = vxor.u32 %v1587, 2147483648
  %v1589 = vmul.f32 %v1588, 1.442695
  %v1590 = vpow.pop %v1589
  %v1591 = vadd.f32 %v1590, 1.0
  %v1592 = vrcp.pop %v1591
  %v1593 = vmul.f32 %v1591, %v1592
  %v1594 = vsub.f32 1.0, %v1593
  %v1595 = vmul.f32 %v1592, %v1594
  %v1596 = vadd.f32 %v1592, %v1595
  %vm1597 = vweird.f32 %v1591
  %vm1598 = vweird.f32 %v1592
  %vm1599 = vmor %vm1597, %vm1598
  %v1600 = vsel %vm1599, %v1592, %v1596
  %v1601 = vand.u32 2147483647, %v1591
  %vm1602 = vcmp.eq.f32.partialorder %v1601, 8.507059e+37
  %v1603 = vand.u32 %v1591, 2147483648
  %v1604 = vor.u32 1.1754944e-38, %v1603
  %v1605 = vsel %vm1602, %v1604, %v1600
  %v1606 = vmul.f32 1.0, %v1605
  %v1607 = vadd.f32 %v1566, %v124
  %v1608 = vmul.f32 %v1586, %v1607
  %v1609 = vadd.f32 %v1442, %v1608
  %v1610 = vtanh.pop %v1609
  %v1611 = vsub.f32 %v1438, %v1610
  %v1612 = vmul.f32 %v1606, %v1611
  %v1613 = vadd.f32 %v1610, %v1612
  %1614 = vst [vmem:[%s3] sm:$0xff] %v1613
  // Predicated region
  $region14: #{_lambda_.1} parent=0 // pred_check
    _
  $region15: #{_lambda_.1} parent=0 // pred_check_branch
    %1616 = sbr.rel (0) target = $region17
  $region16: #{_lambda_.1} parent=0 // pred_region
    _
  $region17: #{_lambda_.1} parent=0 // pred_fallthru
    _
  // Predicated region
  $region18: #{_lambda_.1} parent=0 // pred_check
    _
  $region19: #{_lambda_.1} parent=0 // pred_check_branch
    %1618 = sbr.rel (0) target = $region21
  $region20: #{_lambda_.1} parent=0 // pred_region
    _
  $region21: #{_lambda_.1} parent=0 // pred_fallthru
    _

</llo_original>
